<compile_context>
chip_gen: v7x
topology: tpu7x:2x2x1
jax: 0.10.0
libtpu: 0.0.40
codegen_flags: <defaults>
</compile_context>

<pallas_src>
import math
import functools

import jax
import jax.numpy as jnp
from jax.experimental import pallas as pl
from jax.experimental.pallas import tpu as pltpu

# ---- small model config (consistent with the module's constructor) ----------
D = 32            # feature_dim
NHEAD = 2         # nhead
DH = D // NHEAD   # head dim
NHID = 64         # dim_feedforward (nhid)
NLAYERS = 2       # nlayers (small for the demo)
C = 4             # num_class -> ctx tokens
B = 8             # number of feature (query) tokens
S = C + B         # encoder sequence length
EPS = 1e-5        # LayerNorm eps (PyTorch default)
NEG_INF = -1e30   # additive mask fill (underflows to exactly 0 after softmax)

# ---- packed weight slab layout -----------------------------------------------
# One (SLAB_ROWS, SLAB_LANES) slot per encoder layer, plus one slot for the head.
SLAB_ROWS = 40            # 32 "matrix" rows (input dim D) + 8 vector rows
SLAB_LANES = 256          # lane-dense: 96 (Wqkv^T) + 32 (Wo^T) + 64 (W1^T) + 2*32 (W2^T halves)
OFF_QKV = 0               # [  0,  96)  in_proj_weight.T
OFF_WO = 3 * D            # [ 96, 128)  out_proj.weight.T
OFF_W1 = 4 * D            # [128, 192)  linear1.weight.T
OFF_W2A = 4 * D + NHID    # [192, 224)  linear2.weight.T[:32, :]
OFF_W2B = OFF_W2A + D     # [224, 256)  linear2.weight.T[32:, :]
ROW_BQKV, ROW_BO, ROW_B1, ROW_B2 = 32, 33, 34, 35
ROW_G1, ROW_BE1, ROW_G2, ROW_BE2 = 36, 37, 38, 39
# Head slot (slot index NLAYERS): rows 0:32, lanes [0,32)=Wsh^T, [32,64)=Wmu^T,
# [64,96)=Wsg^T; row 32 holds the three biases at the same lane offsets.


def _softplus20(x):
    # f.softplus(x, beta=1, threshold=20)
    return jnp.where(x > 20.0, x, jnp.log1p(jnp.exp(jnp.minimum(x, 20.0))))


def _layernorm(x, gamma, beta):
    mu = jnp.mean(x, axis=-1, keepdims=True)
    var = jnp.mean((x - mu) ** 2, axis=-1, keepdims=True)
    return (x - mu) * jax.lax.rsqrt(var + EPS) * gamma + beta


# -----------------------------------------------------------------------------
# Fused kernel: one grid step = one (ctx, features) sequence, weights resident.
# -----------------------------------------------------------------------------
def fused_forward_kernel(ctx_ref, feat_ref, w_ref, out_ref):
    # x = concat([ctx, features], 0) built in-kernel (no host-side concat).
    x = jnp.concatenate([ctx_ref[...], feat_ref[...]], axis=0)          # (S, D)

    # Additive mask == generate_D_q_matrix(S, B): allowed iff col<C or row==col.
    row = jax.lax.broadcasted_iota(jnp.int32, (S, S), 0)
    col = jax.lax.broadcasted_iota(jnp.int32, (S, S), 1)
    mask = jnp.where((col < C) | (row == col), 0.0, NEG_INF).astype(jnp.float32)

    scale = 1.0 / math.sqrt(DH)

    for l in range(NLAYERS):                                            # static unroll
        wqkv = w_ref[l, 0:D, OFF_QKV:OFF_QKV + 3 * D]                   # (D, 3D)
        w1 = w_ref[l, 0:D, OFF_W1:OFF_W1 + NHID]                        # (D, NHID)
        w2a = w_ref[l, 0:D, OFF_W2A:OFF_W2A + D]                        # W2^T[:32]
        w2b = w_ref[l, 0:D, OFF_W2B:OFF_W2B + D]                        # W2^T[32:]
        b_qkv = w_ref[l, ROW_BQKV:ROW_BQKV + 1, 0:3 * D]
        b_o = w_ref[l, ROW_BO:ROW_BO + 1, 0:D]
        b_1 = w_ref[l, ROW_B1:ROW_B1 + 1, 0:NHID]
        b_2 = w_ref[l, ROW_B2:ROW_B2 + 1, 0:D]
        g1 = w_ref[l, ROW_G1:ROW_G1 + 1, 0:D]
        be1 = w_ref[l, ROW_BE1:ROW_BE1 + 1, 0:D]
        g2 = w_ref[l, ROW_G2:ROW_G2 + 1, 0:D]
        be2 = w_ref[l, ROW_BE2:ROW_BE2 + 1, 0:D]

        # ---- self-attention: fused QKV projection ----
        qkv = jnp.dot(x, wqkv, preferred_element_type=jnp.float32) + b_qkv   # (S, 3D)

        # Per-head attention; output projection folded per head:
        # concat(heads) @ Wo^T == sum_h head_h @ Wo^T[h*DH:(h+1)*DH, :]
        attn = None
        for h in range(NHEAD):
            qh = qkv[:, h * DH:(h + 1) * DH] * scale
            kh = qkv[:, D + h * DH:D + (h + 1) * DH]
            vh = qkv[:, 2 * D + h * DH:2 * D + (h + 1) * DH]
            s = jax.lax.dot_general(qh, kh, (((1,), (1,)), ((), ())),
                                    preferred_element_type=jnp.float32) + mask
            s = s - jnp.max(s, axis=-1, keepdims=True)
            p = jnp.exp(s)
            p = p / jnp.sum(p, axis=-1, keepdims=True)                  # exact softmax
            hv = jnp.dot(p, vh, preferred_element_type=jnp.float32)     # (S, DH)
            wo_h = w_ref[l, h * DH:(h + 1) * DH, OFF_WO:OFF_WO + D]     # (DH, D)
            contrib = jnp.dot(hv, wo_h, preferred_element_type=jnp.float32)
            attn = contrib if attn is None else attn + contrib
        attn = attn + b_o

        # ---- residual + norm1 (post-norm) ----
        x = _layernorm(x + attn, g1, be1)

        # ---- feed-forward: relu(x W1 + b1) W2^T (split into two 32-lane chunks) ----
        ffh = jnp.maximum(jnp.dot(x, w1, preferred_element_type=jnp.float32) + b_1, 0.0)
        ff = (jnp.dot(ffh[:, 0:D], w2a, preferred_element_type=jnp.float32)
              + jnp.dot(ffh[:, D:NHID], w2b, preferred_element_type=jnp.float32) + b_2)

        # ---- residual + norm2 ----
        x = _layernorm(x + ff, g2, be2)

    # ---- classifier_generator head on ctx tokens (outputs[:num_class]) ----
    xc = x[0:C, :]                                                      # (C, D)
    wsh = w_ref[NLAYERS, 0:D, 0:D]
    wmu = w_ref[NLAYERS, 0:D, D:2 * D]
    wsg = w_ref[NLAYERS, 0:D, 2 * D:3 * D]
    bsh = w_ref[NLAYERS, 32:33, 0:D]
    bmu = w_ref[NLAYERS, 32:33, D:2 * D]
    bsg = w_ref[NLAYERS, 32:33, 2 * D:3 * D]

    z = jnp.maximum(jnp.dot(xc, wsh, preferred_element_type=jnp.float32) + bsh, 0.0)
    mu = jnp.dot(z, wmu, preferred_element_type=jnp.float32) + bmu
    sg = jnp.dot(z, wsg, preferred_element_type=jnp.float32) + bsg
    # softplus inside classifier_generator, then again in TransformerModel_67
    sg = _softplus20(_softplus20(sg))

    # Single fused output block: rows [0, C) = mu, rows [C, 2C) = sigma.
    out_ref[...] = jnp.concatenate([mu, sg], axis=0)

    # TODO(synk): feats = feature_net(outputs[num_class:]) is computed in the
    # PyTorch reference but never returned or used, so it is omitted here.


# -----------------------------------------------------------------------------
# Parameter init (deterministic, PyTorch-Linear-like uniform), packed slab + raw.
# -----------------------------------------------------------------------------
def _linear_init(key, out_f, in_f):
    kw, kb = jax.random.split(key)
    bound = 1.0 / math.sqrt(in_f)
    w = jax.random.uniform(kw, (out_f, in_f), jnp.float32, -bound, bound)
    b = jax.random.uniform(kb, (out_f,), jnp.float32, -bound, bound)
    return w, b


def init_params(key):
    """Returns (packed weight slab (NLAYERS+1, 40, 256), raw param pytree)."""
    keys = jax.random.split(key, NLAYERS + 1)
    slabs, raw_layers = [], []
    for li in range(NLAYERS):
        ks = jax.random.split(keys[li], 4)
        ipw, ipb = _linear_init(ks[0], 3 * D, D)          # in_proj  (3D, D)
        wo, bo = _linear_init(ks[1], D, D)                # out_proj
        w1, b1 = _linear_init(ks[2], NHID, D)             # linear1
        w2, b2 = _linear_init(ks[3], D, NHID)             # linear2
        w2t = w2.T                                        # (NHID, D)

        slab = jnp.zeros((SLAB_ROWS, SLAB_LANES), jnp.float32)
        slab = slab.at[0:D, OFF_QKV:OFF_QKV + 3 * D].set(ipw.T)
        slab = slab.at[0:D, OFF_WO:OFF_WO + D].set(wo.T)
        slab = slab.at[0:D, OFF_W1:OFF_W1 + NHID].set(w1.T)
        slab = slab.at[0:D, OFF_W2A:OFF_W2A + D].set(w2t[0:D, :])
        slab = slab.at[0:D, OFF_W2B:OFF_W2B + D].set(w2t[D:NHID, :])
        slab = slab.at[ROW_BQKV, 0:3 * D].set(ipb)
        slab = slab.at[ROW_BO, 0:D].set(bo)
        slab = slab.at[ROW_B1, 0:NHID].set(b1)
        slab = slab.at[ROW_B2, 0:D].set(b2)
        slab = slab.at[ROW_G1, 0:D].set(1.0)              # LayerNorm gammas = 1
        slab = slab.at[ROW_G2, 0:D].set(1.0)              # betas stay 0
        slabs.append(slab)
        raw_layers.append(dict(ipw=ipw, ipb=ipb, wo=wo, bo=bo,
                               w1=w1, b1=b1, w2=w2, b2=b2))

    kh = jax.random.split(keys[-1], 3)
    wsh, bsh = _linear_init(kh[0], D, D)                  # shared_net.Linear
    wmu, bmu = _linear_init(kh[1], D, D)                  # shared_mu
    wsg, bsg = _linear_init(kh[2], D, D)                  # shared_sigma
    hslab = jnp.zeros((SLAB_ROWS, SLAB_LANES), jnp.float32)
    hslab = hslab.at[0:D, 0:D].set(wsh.T)
    hslab = hslab.at[0:D, D:2 * D].set(wmu.T)
    hslab = hslab.at[0:D, 2 * D:3 * D].set(wsg.T)
    hslab = hslab.at[32, 0:D].set(bsh)
    hslab = hslab.at[32, D:2 * D].set(bmu)
    hslab = hslab.at[32, 2 * D:3 * D].set(bsg)
    slabs.append(hslab)

    w_all = jnp.stack(slabs)                              # (NLAYERS+1, 40, 256)
    raw = dict(layers=raw_layers,
               head=dict(wsh=wsh, bsh=bsh, wmu=wmu, bmu=bmu, wsg=wsg, bsg=bsg))
    return w_all, raw


# -----------------------------------------------------------------------------
# Forward wrapper: one pallas_call, grid over sequences, weights resident.
# -----------------------------------------------------------------------------
def _cost_estimate(n_seq):
    per_layer = (2 * S * D * 3 * D                         # fused QKV projection
                 + NHEAD * 2 * (2 * S * S * DH)            # scores + P@V
                 + NHEAD * 2 * S * DH * D                  # folded output projection
                 + 2 * S * D * NHID + 2 * S * NHID * D)    # FFN
    head = 3 * 2 * C * D * D
    flops = n_seq * (NLAYERS * per_layer + head)
    transcendentals = n_seq * (NLAYERS * NHEAD * S * S + 4 * C * D + NLAYERS * 2 * S)
    bytes_accessed = (n_seq * (S * D + 2 * C * D) * 4
                      + (NLAYERS + 1) * SLAB_ROWS * SLAB_LANES * 4)
    return pl.CostEstimate(flops=flops, transcendentals=transcendentals,
                           bytes_accessed=bytes_accessed)


def _forward_batched(ctx_b, feat_b, w_all):
    n_seq = ctx_b.shape[0]
    out = pl.pallas_call(
        fused_forward_kernel,
        grid=(n_seq,),
        in_specs=[
            pl.BlockSpec((None, C, D), lambda i: (i, 0, 0)),            # ctx block
            pl.BlockSpec((None, B, D), lambda i: (i, 0, 0)),            # features block
            # Whole weight slab, constant block index -> DMA'd once, stays resident.
            pl.BlockSpec((NLAYERS + 1, SLAB_ROWS, SLAB_LANES), lambda i: (0, 0, 0)),
        ],
        out_specs=pl.BlockSpec((None, 2 * C, D), lambda i: (i, 0, 0)),
        out_shape=jax.ShapeDtypeStruct((n_seq, 2 * C, D), jnp.float32),
        compiler_params=pltpu.CompilerParams(dimension_semantics=("parallel",)),
        cost_estimate=_cost_estimate(n_seq),
    )(ctx_b, feat_b, w_all)
    return out[:, :C, :], out[:, C:, :]


@jax.jit
def transformer_model_67_forward(ctx, features, w_all):
    """Matches TransformerModel_67.forward(ctx, features) (ctx-is-not-None branch).

    Accepts a single (C, D)/(B, D) pair, or batched (N, C, D)/(N, B, D) pairs
    processed through the kernel's parallel grid axis.
    """
    ctx = ctx.astype(jnp.float32)
    features = features.astype(jnp.float32)
    if ctx.ndim == 2:
        mu, sigma = _forward_batched(ctx[None], features[None], w_all)
        return mu[0], sigma[0]
    return _forward_batched(ctx, features, w_all)


# -----------------------------------------------------------------------------
# Pure-JAX reference (mirrors the PyTorch module in eval mode) for verification.
# -----------------------------------------------------------------------------
def _layernorm_ref(x):
    m = jnp.mean(x, axis=-1, keepdims=True)
    v = jnp.mean((x - m) ** 2, axis=-1, keepdims=True)
    return (x - m) * jax.lax.rsqrt(v + EPS)


def reference_forward(ctx, features, raw):
    dot = functools.partial(jnp.dot, precision=jax.lax.Precision.HIGHEST)
    x = jnp.concatenate([ctx, features], axis=0).astype(jnp.float32)
    idx = jnp.arange(S)
    mask = jnp.where((idx[None, :] < C) | (idx[:, None] == idx[None, :]), 0.0, NEG_INF)
    for lyr in raw["layers"]:
        qkv = dot(x, lyr["ipw"].T) + lyr["ipb"]
        q, k, v = qkv[:, :D], qkv[:, D:2 * D], qkv[:, 2 * D:]
        heads = []
        for h in range(NHEAD):
            sl = slice(h * DH, (h + 1) * DH)
            s = dot(q[:, sl] / math.sqrt(DH), k[:, sl].T) + mask
            heads.append(dot(jax.nn.softmax(s, axis=-1), v[:, sl]))
        attn = dot(jnp.concatenate(heads, axis=-1), lyr["wo"].T) + lyr["bo"]
        x = _layernorm_ref(x + attn)
        ff = dot(jax.nn.relu(dot(x, lyr["w1"].T) + lyr["b1"]), lyr["w2"].T) + lyr["b2"]
        x = _layernorm_ref(x + ff)
    hd = raw["head"]
    z = jax.nn.relu(dot(x[:C], hd["wsh"].T) + hd["bsh"])
    mu = dot(z, hd["wmu"].T) + hd["bmu"]
    sigma = _softplus20(_softplus20(dot(z, hd["wsg"].T) + hd["bsg"]))
    return mu, sigma


if __name__ == "__main__":
    key = jax.random.PRNGKey(0)
    k_ctx, k_feat, k_par, k_batch = jax.random.split(key, 4)

    w_all, raw = init_params(k_par)

    # --- single (ctx, features) pair: exactly the module's forward signature ---
    ctx = jax.random.normal(k_ctx, (C, D), jnp.float32)          # (num_class, D)
    features = jax.random.normal(k_feat, (B, D), jnp.float32)    # (batch, D)
    mu, sigma = transformer_model_67_forward(ctx, features, w_all)
    jax.block_until_ready((mu, sigma))
    assert mu.shape == (C, D) and sigma.shape == (C, D)

    mu_ref, sigma_ref = reference_forward(ctx, features, raw)
    assert bool(jnp.allclose(mu, mu_ref, rtol=1e-2, atol=1e-2))
    assert bool(jnp.allclose(sigma, sigma_ref, rtol=1e-2, atol=1e-2))

    # --- batched path: many sequences through the grid, weights held resident ---
    N_SEQ = 8
    ctx_b = jnp.concatenate(
        [ctx[None], jax.random.normal(k_batch, (N_SEQ - 1, C, D), jnp.float32)], 0)
    feat_b = jnp.concatenate(
        [features[None],
         jax.random.normal(jax.random.fold_in(k_batch, 1), (N_SEQ - 1, B, D),
                           jnp.float32)], 0)
    mu_b, sigma_b = transformer_model_67_forward(ctx_b, feat_b, w_all)
    jax.block_until_ready((mu_b, sigma_b))

    assert mu_b.shape == (N_SEQ, C, D) and sigma_b.shape == (N_SEQ, C, D)
    assert bool(jnp.all(jnp.isfinite(mu_b))) and bool(jnp.all(jnp.isfinite(sigma_b)))
    assert bool(jnp.all(sigma_b >= 0.0))
    assert bool(jnp.allclose(mu_b[0], mu, rtol=1e-5, atol=1e-5))
    assert bool(jnp.allclose(sigma_b[0], sigma, rtol=1e-5, atol=1e-5))
    print("KERNEL_OK")
</pallas_src>

<mosaic_0001>
module attributes {stable_mosaic.version = 11 : i64} {
  func.func @fused_forward_kernel(%arg0: i32, %arg1: memref<1x4x32xf32, #tpu.memory_space<vmem>>, %arg2: memref<1x8x32xf32, #tpu.memory_space<vmem>>, %arg3: memref<3x40x256xf32, #tpu.memory_space<vmem>>, %arg4: memref<1x8x32xf32, #tpu.memory_space<vmem>>) attributes {dimension_semantics = [#tpu.dimension_semantics<parallel>], iteration_bounds = array<i64: 1>, scalar_prefetch = 0 : i64, scratch_operands = 0 : i64, tpu.core_type = #tpu.core_type<tc>, window_params = [{transform_indices = @transform_0, window_bounds = array<i64: 1, 4, 32>}, {transform_indices = @transform_1, window_bounds = array<i64: 1, 8, 32>}, {pipeline_mode = #tpu.pipeline_mode<synchronous>, transform_indices = @transform_2, window_bounds = array<i64: 3, 40, 256>}, {transform_indices = @transform_3, window_bounds = array<i64: 1, 8, 32>}]} {
    %c0 = arith.constant 0 : index
    %c0_0 = arith.constant 0 : index
    %c0_1 = arith.constant 0 : index
    %0 = vector.load %arg1[%c0, %c0_0, %c0_1] : memref<1x4x32xf32, #tpu.memory_space<vmem>>, vector<1x4x32xf32>
    %1 = vector.shape_cast %0 : vector<1x4x32xf32> to vector<4x32xf32>
    %c0_2 = arith.constant 0 : index
    %c0_3 = arith.constant 0 : index
    %c0_4 = arith.constant 0 : index
    %2 = vector.load %arg2[%c0_2, %c0_3, %c0_4] : memref<1x8x32xf32, #tpu.memory_space<vmem>>, vector<1x8x32xf32>
    %3 = vector.shape_cast %2 : vector<1x8x32xf32> to vector<8x32xf32>
    %4 = tpu.concatenate %1, %3 in 0 : vector<4x32xf32>, vector<8x32xf32> -> vector<12x32xf32>
    %5 = tpu.iota {dimensions = array<i32: 0>} : vector<12x12xi32>
    %6 = tpu.iota {dimensions = array<i32: 1>} : vector<12x12xi32>
    %c4_i32 = arith.constant 4 : i32
    %7 = vector.broadcast %c4_i32 : i32 to vector<12x12xi32>
    %8 = arith.cmpi slt, %6, %7 : vector<12x12xi32>
    %9 = arith.cmpi eq, %5, %6 : vector<12x12xi32>
    %10 = arith.ori %8, %9 : vector<12x12xi1>
    %cst = arith.constant 0.000000e+00 : f32
    %cst_5 = arith.constant -1.000000e+30 : f32
    %11 = vector.broadcast %cst : f32 to vector<12x12xf32>
    %12 = vector.broadcast %cst_5 : f32 to vector<12x12xf32>
    %13 = arith.select %10, %11, %12 : vector<12x12xi1>, vector<12x12xf32>
    %c0_6 = arith.constant 0 : index
    %c0_7 = arith.constant 0 : index
    %c0_8 = arith.constant 0 : index
    %14 = vector.load %arg3[%c0_6, %c0_7, %c0_8] : memref<3x40x256xf32, #tpu.memory_space<vmem>>, vector<1x32x96xf32>
    %15 = vector.shape_cast %14 : vector<1x32x96xf32> to vector<32x96xf32>
    %c0_9 = arith.constant 0 : index
    %c0_10 = arith.constant 0 : index
    %c128 = arith.constant 128 : index
    %16 = vector.load %arg3[%c0_9, %c0_10, %c128] : memref<3x40x256xf32, #tpu.memory_space<vmem>>, vector<1x32x64xf32>
    %17 = vector.shape_cast %16 : vector<1x32x64xf32> to vector<32x64xf32>
    %c0_11 = arith.constant 0 : index
    %c0_12 = arith.constant 0 : index
    %c192 = arith.constant 192 : index
    %18 = vector.load %arg3[%c0_11, %c0_12, %c192] : memref<3x40x256xf32, #tpu.memory_space<vmem>>, vector<1x32x32xf32>
    %19 = vector.shape_cast %18 : vector<1x32x32xf32> to vector<32x32xf32>
    %c0_13 = arith.constant 0 : index
    %c0_14 = arith.constant 0 : index
    %c224 = arith.constant 224 : index
    %20 = vector.load %arg3[%c0_13, %c0_14, %c224] : memref<3x40x256xf32, #tpu.memory_space<vmem>>, vector<1x32x32xf32>
    %21 = vector.shape_cast %20 : vector<1x32x32xf32> to vector<32x32xf32>
    %c0_15 = arith.constant 0 : index
    %c32 = arith.constant 32 : index
    %c0_16 = arith.constant 0 : index
    %22 = vector.load %arg3[%c0_15, %c32, %c0_16] : memref<3x40x256xf32, #tpu.memory_space<vmem>>, vector<1x1x96xf32>
    %23 = vector.shape_cast %22 : vector<1x1x96xf32> to vector<1x96xf32>
    %c0_17 = arith.constant 0 : index
    %c33 = arith.constant 33 : index
    %c0_18 = arith.constant 0 : index
    %24 = vector.load %arg3[%c0_17, %c33, %c0_18] : memref<3x40x256xf32, #tpu.memory_space<vmem>>, vector<1x1x32xf32>
    %25 = vector.shape_cast %24 : vector<1x1x32xf32> to vector<1x32xf32>
    %c0_19 = arith.constant 0 : index
    %c34 = arith.constant 34 : index
    %c0_20 = arith.constant 0 : index
    %26 = vector.load %arg3[%c0_19, %c34, %c0_20] : memref<3x40x256xf32, #tpu.memory_space<vmem>>, vector<1x1x64xf32>
    %27 = vector.shape_cast %26 : vector<1x1x64xf32> to vector<1x64xf32>
    %c0_21 = arith.constant 0 : index
    %c35 = arith.constant 35 : index
    %c0_22 = arith.constant 0 : index
    %28 = vector.load %arg3[%c0_21, %c35, %c0_22] : memref<3x40x256xf32, #tpu.memory_space<vmem>>, vector<1x1x32xf32>
    %29 = vector.shape_cast %28 : vector<1x1x32xf32> to vector<1x32xf32>
    %c0_23 = arith.constant 0 : index
    %c36 = arith.constant 36 : index
    %c0_24 = arith.constant 0 : index
    %30 = vector.load %arg3[%c0_23, %c36, %c0_24] : memref<3x40x256xf32, #tpu.memory_space<vmem>>, vector<1x1x32xf32>
    %31 = vector.shape_cast %30 : vector<1x1x32xf32> to vector<1x32xf32>
    %c0_25 = arith.constant 0 : index
    %c37 = arith.constant 37 : index
    %c0_26 = arith.constant 0 : index
    %32 = vector.load %arg3[%c0_25, %c37, %c0_26] : memref<3x40x256xf32, #tpu.memory_space<vmem>>, vector<1x1x32xf32>
    %33 = vector.shape_cast %32 : vector<1x1x32xf32> to vector<1x32xf32>
    %c0_27 = arith.constant 0 : index
    %c38 = arith.constant 38 : index
    %c0_28 = arith.constant 0 : index
    %34 = vector.load %arg3[%c0_27, %c38, %c0_28] : memref<3x40x256xf32, #tpu.memory_space<vmem>>, vector<1x1x32xf32>
    %35 = vector.shape_cast %34 : vector<1x1x32xf32> to vector<1x32xf32>
    %c0_29 = arith.constant 0 : index
    %c39 = arith.constant 39 : index
    %c0_30 = arith.constant 0 : index
    %36 = vector.load %arg3[%c0_29, %c39, %c0_30] : memref<3x40x256xf32, #tpu.memory_space<vmem>>, vector<1x1x32xf32>
    %37 = vector.shape_cast %36 : vector<1x1x32xf32> to vector<1x32xf32>
    %cst_31 = arith.constant dense<0.000000e+00> : vector<12x96xf32>
    %38 = tpu.matmul %4, %15, %cst_31 {dimension_numbers = #tpu.dot_dimension_numbers<[1], [0], [0], [1], [0, 0, 1, 1], [], []>} : vector<12x32xf32>, vector<32x96xf32>, vector<12x96xf32> -> vector<12x96xf32>
    %39 = vector.broadcast %23 : vector<1x96xf32> to vector<12x96xf32>
    %40 = arith.addf %38, %39 : vector<12x96xf32>
    %41 = vector.extract_strided_slice %40 {offsets = [0, 0], sizes = [12, 16], strides = [1, 1]} : vector<12x96xf32> to vector<12x16xf32>
    %cst_32 = arith.constant 2.500000e-01 : f32
    %42 = vector.broadcast %cst_32 : f32 to vector<12x16xf32>
    %43 = arith.mulf %41, %42 : vector<12x16xf32>
    %44 = vector.extract_strided_slice %40 {offsets = [0, 32], sizes = [12, 16], strides = [1, 1]} : vector<12x96xf32> to vector<12x16xf32>
    %45 = vector.extract_strided_slice %40 {offsets = [0, 64], sizes = [12, 16], strides = [1, 1]} : vector<12x96xf32> to vector<12x16xf32>
    %cst_33 = arith.constant dense<0.000000e+00> : vector<12x12xf32>
    %46 = tpu.matmul %43, %44, %cst_33 {dimension_numbers = #tpu.dot_dimension_numbers<[1], [1], [0], [0], [0, 0, 1, 0], [], []>} : vector<12x16xf32>, vector<12x16xf32>, vector<12x12xf32> -> vector<12x12xf32>
    %47 = arith.addf %46, %13 : vector<12x12xf32>
    %cst_34 = arith.constant dense<0xFF800000> : vector<12xf32>
    %48 = vector.multi_reduction <maximumf>, %47, %cst_34 [1] : vector<12x12xf32> to vector<12xf32>
    %49 = vector.shape_cast %48 : vector<12xf32> to vector<12x1xf32>
    %50 = vector.broadcast %49 : vector<12x1xf32> to vector<12x12xf32>
    %51 = arith.subf %47, %50 : vector<12x12xf32>
    %52 = math.exp %51 : vector<12x12xf32>
    %cst_35 = arith.constant dense<0.000000e+00> : vector<12xf32>
    %53 = vector.multi_reduction <add>, %52, %cst_35 [1] : vector<12x12xf32> to vector<12xf32>
    %54 = vector.shape_cast %53 : vector<12xf32> to vector<12x1xf32>
    %55 = vector.broadcast %54 : vector<12x1xf32> to vector<12x12xf32>
    %56 = arith.divf %52, %55 : vector<12x12xf32>
    %cst_36 = arith.constant dense<0.000000e+00> : vector<12x16xf32>
    %57 = tpu.matmul %56, %45, %cst_36 {dimension_numbers = #tpu.dot_dimension_numbers<[1], [0], [0], [1], [0, 0, 1, 1], [], []>} : vector<12x12xf32>, vector<12x16xf32>, vector<12x16xf32> -> vector<12x16xf32>
    %c0_37 = arith.constant 0 : index
    %c0_38 = arith.constant 0 : index
    %c96 = arith.constant 96 : index
    %58 = vector.load %arg3[%c0_37, %c0_38, %c96] : memref<3x40x256xf32, #tpu.memory_space<vmem>>, vector<1x16x32xf32>
    %59 = vector.shape_cast %58 : vector<1x16x32xf32> to vector<16x32xf32>
    %cst_39 = arith.constant dense<0.000000e+00> : vector<12x32xf32>
    %60 = tpu.matmul %57, %59, %cst_39 {dimension_numbers = #tpu.dot_dimension_numbers<[1], [0], [0], [1], [0, 0, 1, 1], [], []>} : vector<12x16xf32>, vector<16x32xf32>, vector<12x32xf32> -> vector<12x32xf32>
    %61 = vector.extract_strided_slice %40 {offsets = [0, 16], sizes = [12, 16], strides = [1, 1]} : vector<12x96xf32> to vector<12x16xf32>
    %cst_40 = arith.constant 2.500000e-01 : f32
    %62 = vector.broadcast %cst_40 : f32 to vector<12x16xf32>
    %63 = arith.mulf %61, %62 : vector<12x16xf32>
    %64 = vector.extract_strided_slice %40 {offsets = [0, 48], sizes = [12, 16], strides = [1, 1]} : vector<12x96xf32> to vector<12x16xf32>
    %65 = vector.extract_strided_slice %40 {offsets = [0, 80], sizes = [12, 16], strides = [1, 1]} : vector<12x96xf32> to vector<12x16xf32>
    %cst_41 = arith.constant dense<0.000000e+00> : vector<12x12xf32>
    %66 = tpu.matmul %63, %64, %cst_41 {dimension_numbers = #tpu.dot_dimension_numbers<[1], [1], [0], [0], [0, 0, 1, 0], [], []>} : vector<12x16xf32>, vector<12x16xf32>, vector<12x12xf32> -> vector<12x12xf32>
    %67 = arith.addf %66, %13 : vector<12x12xf32>
    %cst_42 = arith.constant dense<0xFF800000> : vector<12xf32>
    %68 = vector.multi_reduction <maximumf>, %67, %cst_42 [1] : vector<12x12xf32> to vector<12xf32>
    %69 = vector.shape_cast %68 : vector<12xf32> to vector<12x1xf32>
    %70 = vector.broadcast %69 : vector<12x1xf32> to vector<12x12xf32>
    %71 = arith.subf %67, %70 : vector<12x12xf32>
    %72 = math.exp %71 : vector<12x12xf32>
    %cst_43 = arith.constant dense<0.000000e+00> : vector<12xf32>
    %73 = vector.multi_reduction <add>, %72, %cst_43 [1] : vector<12x12xf32> to vector<12xf32>
    %74 = vector.shape_cast %73 : vector<12xf32> to vector<12x1xf32>
    %75 = vector.broadcast %74 : vector<12x1xf32> to vector<12x12xf32>
    %76 = arith.divf %72, %75 : vector<12x12xf32>
    %cst_44 = arith.constant dense<0.000000e+00> : vector<12x16xf32>
    %77 = tpu.matmul %76, %65, %cst_44 {dimension_numbers = #tpu.dot_dimension_numbers<[1], [0], [0], [1], [0, 0, 1, 1], [], []>} : vector<12x12xf32>, vector<12x16xf32>, vector<12x16xf32> -> vector<12x16xf32>
    %c0_45 = arith.constant 0 : index
    %c16 = arith.constant 16 : index
    %c96_46 = arith.constant 96 : index
    %78 = vector.load %arg3[%c0_45, %c16, %c96_46] : memref<3x40x256xf32, #tpu.memory_space<vmem>>, vector<1x16x32xf32>
    %79 = vector.shape_cast %78 : vector<1x16x32xf32> to vector<16x32xf32>
    %cst_47 = arith.constant dense<0.000000e+00> : vector<12x32xf32>
    %80 = tpu.matmul %77, %79, %cst_47 {dimension_numbers = #tpu.dot_dimension_numbers<[1], [0], [0], [1], [0, 0, 1, 1], [], []>} : vector<12x16xf32>, vector<16x32xf32>, vector<12x32xf32> -> vector<12x32xf32>
    %81 = arith.addf %60, %80 : vector<12x32xf32>
    %82 = vector.broadcast %25 : vector<1x32xf32> to vector<12x32xf32>
    %83 = arith.addf %81, %82 : vector<12x32xf32>
    %84 = arith.addf %4, %83 : vector<12x32xf32>
    %cst_48 = arith.constant dense<0.000000e+00> : vector<12xf32>
    %85 = vector.multi_reduction <add>, %84, %cst_48 [1] : vector<12x32xf32> to vector<12xf32>
    %86 = vector.shape_cast %85 : vector<12xf32> to vector<12x1xf32>
    %cst_49 = arith.constant 3.200000e+01 : f32
    %87 = vector.broadcast %cst_49 : f32 to vector<12x1xf32>
    %88 = arith.divf %86, %87 : vector<12x1xf32>
    %89 = vector.broadcast %88 : vector<12x1xf32> to vector<12x32xf32>
    %90 = arith.subf %84, %89 : vector<12x32xf32>
    %91 = arith.mulf %90, %90 : vector<12x32xf32>
    %cst_50 = arith.constant dense<0.000000e+00> : vector<12xf32>
    %92 = vector.multi_reduction <add>, %91, %cst_50 [1] : vector<12x32xf32> to vector<12xf32>
    %93 = vector.shape_cast %92 : vector<12xf32> to vector<12x1xf32>
    %cst_51 = arith.constant 3.200000e+01 : f32
    %94 = vector.broadcast %cst_51 : f32 to vector<12x1xf32>
    %95 = arith.divf %93, %94 : vector<12x1xf32>
    %96 = vector.broadcast %88 : vector<12x1xf32> to vector<12x32xf32>
    %97 = arith.subf %84, %96 : vector<12x32xf32>
    %cst_52 = arith.constant 9.99999974E-6 : f32
    %98 = vector.broadcast %cst_52 : f32 to vector<12x1xf32>
    %99 = arith.addf %95, %98 : vector<12x1xf32>
    %100 = math.rsqrt %99 : vector<12x1xf32>
    %101 = vector.broadcast %100 : vector<12x1xf32> to vector<12x32xf32>
    %102 = arith.mulf %97, %101 : vector<12x32xf32>
    %103 = vector.broadcast %31 : vector<1x32xf32> to vector<12x32xf32>
    %104 = arith.mulf %102, %103 : vector<12x32xf32>
    %105 = vector.broadcast %33 : vector<1x32xf32> to vector<12x32xf32>
    %106 = arith.addf %104, %105 : vector<12x32xf32>
    %cst_53 = arith.constant dense<0.000000e+00> : vector<12x64xf32>
    %107 = tpu.matmul %106, %17, %cst_53 {dimension_numbers = #tpu.dot_dimension_numbers<[1], [0], [0], [1], [0, 0, 1, 1], [], []>} : vector<12x32xf32>, vector<32x64xf32>, vector<12x64xf32> -> vector<12x64xf32>
    %108 = vector.broadcast %27 : vector<1x64xf32> to vector<12x64xf32>
    %109 = arith.addf %107, %108 : vector<12x64xf32>
    %cst_54 = arith.constant 0.000000e+00 : f32
    %110 = vector.broadcast %cst_54 : f32 to vector<12x64xf32>
    %111 = arith.maximumf %109, %110 : vector<12x64xf32>
    %112 = vector.extract_strided_slice %111 {offsets = [0, 0], sizes = [12, 32], strides = [1, 1]} : vector<12x64xf32> to vector<12x32xf32>
    %cst_55 = arith.constant dense<0.000000e+00> : vector<12x32xf32>
    %113 = tpu.matmul %112, %19, %cst_55 {dimension_numbers = #tpu.dot_dimension_numbers<[1], [0], [0], [1], [0, 0, 1, 1], [], []>} : vector<12x32xf32>, vector<32x32xf32>, vector<12x32xf32> -> vector<12x32xf32>
    %114 = vector.extract_strided_slice %111 {offsets = [0, 32], sizes = [12, 32], strides = [1, 1]} : vector<12x64xf32> to vector<12x32xf32>
    %cst_56 = arith.constant dense<0.000000e+00> : vector<12x32xf32>
    %115 = tpu.matmul %114, %21, %cst_56 {dimension_numbers = #tpu.dot_dimension_numbers<[1], [0], [0], [1], [0, 0, 1, 1], [], []>} : vector<12x32xf32>, vector<32x32xf32>, vector<12x32xf32> -> vector<12x32xf32>
    %116 = arith.addf %113, %115 : vector<12x32xf32>
    %117 = vector.broadcast %29 : vector<1x32xf32> to vector<12x32xf32>
    %118 = arith.addf %116, %117 : vector<12x32xf32>
    %119 = arith.addf %106, %118 : vector<12x32xf32>
    %cst_57 = arith.constant dense<0.000000e+00> : vector<12xf32>
    %120 = vector.multi_reduction <add>, %119, %cst_57 [1] : vector<12x32xf32> to vector<12xf32>
    %121 = vector.shape_cast %120 : vector<12xf32> to vector<12x1xf32>
    %cst_58 = arith.constant 3.200000e+01 : f32
    %122 = vector.broadcast %cst_58 : f32 to vector<12x1xf32>
    %123 = arith.divf %121, %122 : vector<12x1xf32>
    %124 = vector.broadcast %123 : vector<12x1xf32> to vector<12x32xf32>
    %125 = arith.subf %119, %124 : vector<12x32xf32>
    %126 = arith.mulf %125, %125 : vector<12x32xf32>
    %cst_59 = arith.constant dense<0.000000e+00> : vector<12xf32>
    %127 = vector.multi_reduction <add>, %126, %cst_59 [1] : vector<12x32xf32> to vector<12xf32>
    %128 = vector.shape_cast %127 : vector<12xf32> to vector<12x1xf32>
    %cst_60 = arith.constant 3.200000e+01 : f32
    %129 = vector.broadcast %cst_60 : f32 to vector<12x1xf32>
    %130 = arith.divf %128, %129 : vector<12x1xf32>
    %131 = vector.broadcast %123 : vector<12x1xf32> to vector<12x32xf32>
    %132 = arith.subf %119, %131 : vector<12x32xf32>
    %cst_61 = arith.constant 9.99999974E-6 : f32
    %133 = vector.broadcast %cst_61 : f32 to vector<12x1xf32>
    %134 = arith.addf %130, %133 : vector<12x1xf32>
    %135 = math.rsqrt %134 : vector<12x1xf32>
    %136 = vector.broadcast %135 : vector<12x1xf32> to vector<12x32xf32>
    %137 = arith.mulf %132, %136 : vector<12x32xf32>
    %138 = vector.broadcast %35 : vector<1x32xf32> to vector<12x32xf32>
    %139 = arith.mulf %137, %138 : vector<12x32xf32>
    %140 = vector.broadcast %37 : vector<1x32xf32> to vector<12x32xf32>
    %141 = arith.addf %139, %140 : vector<12x32xf32>
    %c1 = arith.constant 1 : index
    %c0_62 = arith.constant 0 : index
    %c0_63 = arith.constant 0 : index
    %142 = vector.load %arg3[%c1, %c0_62, %c0_63] : memref<3x40x256xf32, #tpu.memory_space<vmem>>, vector<1x32x96xf32>
    %143 = vector.shape_cast %142 : vector<1x32x96xf32> to vector<32x96xf32>
    %c1_64 = arith.constant 1 : index
    %c0_65 = arith.constant 0 : index
    %c128_66 = arith.constant 128 : index
    %144 = vector.load %arg3[%c1_64, %c0_65, %c128_66] : memref<3x40x256xf32, #tpu.memory_space<vmem>>, vector<1x32x64xf32>
    %145 = vector.shape_cast %144 : vector<1x32x64xf32> to vector<32x64xf32>
    %c1_67 = arith.constant 1 : index
    %c0_68 = arith.constant 0 : index
    %c192_69 = arith.constant 192 : index
    %146 = vector.load %arg3[%c1_67, %c0_68, %c192_69] : memref<3x40x256xf32, #tpu.memory_space<vmem>>, vector<1x32x32xf32>
    %147 = vector.shape_cast %146 : vector<1x32x32xf32> to vector<32x32xf32>
    %c1_70 = arith.constant 1 : index
    %c0_71 = arith.constant 0 : index
    %c224_72 = arith.constant 224 : index
    %148 = vector.load %arg3[%c1_70, %c0_71, %c224_72] : memref<3x40x256xf32, #tpu.memory_space<vmem>>, vector<1x32x32xf32>
    %149 = vector.shape_cast %148 : vector<1x32x32xf32> to vector<32x32xf32>
    %c1_73 = arith.constant 1 : index
    %c32_74 = arith.constant 32 : index
    %c0_75 = arith.constant 0 : index
    %150 = vector.load %arg3[%c1_73, %c32_74, %c0_75] : memref<3x40x256xf32, #tpu.memory_space<vmem>>, vector<1x1x96xf32>
    %151 = vector.shape_cast %150 : vector<1x1x96xf32> to vector<1x96xf32>
    %c1_76 = arith.constant 1 : index
    %c33_77 = arith.constant 33 : index
    %c0_78 = arith.constant 0 : index
    %152 = vector.load %arg3[%c1_76, %c33_77, %c0_78] : memref<3x40x256xf32, #tpu.memory_space<vmem>>, vector<1x1x32xf32>
    %153 = vector.shape_cast %152 : vector<1x1x32xf32> to vector<1x32xf32>
    %c1_79 = arith.constant 1 : index
    %c34_80 = arith.constant 34 : index
    %c0_81 = arith.constant 0 : index
    %154 = vector.load %arg3[%c1_79, %c34_80, %c0_81] : memref<3x40x256xf32, #tpu.memory_space<vmem>>, vector<1x1x64xf32>
    %155 = vector.shape_cast %154 : vector<1x1x64xf32> to vector<1x64xf32>
    %c1_82 = arith.constant 1 : index
    %c35_83 = arith.constant 35 : index
    %c0_84 = arith.constant 0 : index
    %156 = vector.load %arg3[%c1_82, %c35_83, %c0_84] : memref<3x40x256xf32, #tpu.memory_space<vmem>>, vector<1x1x32xf32>
    %157 = vector.shape_cast %156 : vector<1x1x32xf32> to vector<1x32xf32>
    %c1_85 = arith.constant 1 : index
    %c36_86 = arith.constant 36 : index
    %c0_87 = arith.constant 0 : index
    %158 = vector.load %arg3[%c1_85, %c36_86, %c0_87] : memref<3x40x256xf32, #tpu.memory_space<vmem>>, vector<1x1x32xf32>
    %159 = vector.shape_cast %158 : vector<1x1x32xf32> to vector<1x32xf32>
    %c1_88 = arith.constant 1 : index
    %c37_89 = arith.constant 37 : index
    %c0_90 = arith.constant 0 : index
    %160 = vector.load %arg3[%c1_88, %c37_89, %c0_90] : memref<3x40x256xf32, #tpu.memory_space<vmem>>, vector<1x1x32xf32>
    %161 = vector.shape_cast %160 : vector<1x1x32xf32> to vector<1x32xf32>
    %c1_91 = arith.constant 1 : index
    %c38_92 = arith.constant 38 : index
    %c0_93 = arith.constant 0 : index
    %162 = vector.load %arg3[%c1_91, %c38_92, %c0_93] : memref<3x40x256xf32, #tpu.memory_space<vmem>>, vector<1x1x32xf32>
    %163 = vector.shape_cast %162 : vector<1x1x32xf32> to vector<1x32xf32>
    %c1_94 = arith.constant 1 : index
    %c39_95 = arith.constant 39 : index
    %c0_96 = arith.constant 0 : index
    %164 = vector.load %arg3[%c1_94, %c39_95, %c0_96] : memref<3x40x256xf32, #tpu.memory_space<vmem>>, vector<1x1x32xf32>
    %165 = vector.shape_cast %164 : vector<1x1x32xf32> to vector<1x32xf32>
    %cst_97 = arith.constant dense<0.000000e+00> : vector<12x96xf32>
    %166 = tpu.matmul %141, %143, %cst_97 {dimension_numbers = #tpu.dot_dimension_numbers<[1], [0], [0], [1], [0, 0, 1, 1], [], []>} : vector<12x32xf32>, vector<32x96xf32>, vector<12x96xf32> -> vector<12x96xf32>
    %167 = vector.broadcast %151 : vector<1x96xf32> to vector<12x96xf32>
    %168 = arith.addf %166, %167 : vector<12x96xf32>
    %169 = vector.extract_strided_slice %168 {offsets = [0, 0], sizes = [12, 16], strides = [1, 1]} : vector<12x96xf32> to vector<12x16xf32>
    %cst_98 = arith.constant 2.500000e-01 : f32
    %170 = vector.broadcast %cst_98 : f32 to vector<12x16xf32>
    %171 = arith.mulf %169, %170 : vector<12x16xf32>
    %172 = vector.extract_strided_slice %168 {offsets = [0, 32], sizes = [12, 16], strides = [1, 1]} : vector<12x96xf32> to vector<12x16xf32>
    %173 = vector.extract_strided_slice %168 {offsets = [0, 64], sizes = [12, 16], strides = [1, 1]} : vector<12x96xf32> to vector<12x16xf32>
    %cst_99 = arith.constant dense<0.000000e+00> : vector<12x12xf32>
    %174 = tpu.matmul %171, %172, %cst_99 {dimension_numbers = #tpu.dot_dimension_numbers<[1], [1], [0], [0], [0, 0, 1, 0], [], []>} : vector<12x16xf32>, vector<12x16xf32>, vector<12x12xf32> -> vector<12x12xf32>
    %175 = arith.addf %174, %13 : vector<12x12xf32>
    %cst_100 = arith.constant dense<0xFF800000> : vector<12xf32>
    %176 = vector.multi_reduction <maximumf>, %175, %cst_100 [1] : vector<12x12xf32> to vector<12xf32>
    %177 = vector.shape_cast %176 : vector<12xf32> to vector<12x1xf32>
    %178 = vector.broadcast %177 : vector<12x1xf32> to vector<12x12xf32>
    %179 = arith.subf %175, %178 : vector<12x12xf32>
    %180 = math.exp %179 : vector<12x12xf32>
    %cst_101 = arith.constant dense<0.000000e+00> : vector<12xf32>
    %181 = vector.multi_reduction <add>, %180, %cst_101 [1] : vector<12x12xf32> to vector<12xf32>
    %182 = vector.shape_cast %181 : vector<12xf32> to vector<12x1xf32>
    %183 = vector.broadcast %182 : vector<12x1xf32> to vector<12x12xf32>
    %184 = arith.divf %180, %183 : vector<12x12xf32>
    %cst_102 = arith.constant dense<0.000000e+00> : vector<12x16xf32>
    %185 = tpu.matmul %184, %173, %cst_102 {dimension_numbers = #tpu.dot_dimension_numbers<[1], [0], [0], [1], [0, 0, 1, 1], [], []>} : vector<12x12xf32>, vector<12x16xf32>, vector<12x16xf32> -> vector<12x16xf32>
    %c1_103 = arith.constant 1 : index
    %c0_104 = arith.constant 0 : index
    %c96_105 = arith.constant 96 : index
    %186 = vector.load %arg3[%c1_103, %c0_104, %c96_105] : memref<3x40x256xf32, #tpu.memory_space<vmem>>, vector<1x16x32xf32>
    %187 = vector.shape_cast %186 : vector<1x16x32xf32> to vector<16x32xf32>
    %cst_106 = arith.constant dense<0.000000e+00> : vector<12x32xf32>
    %188 = tpu.matmul %185, %187, %cst_106 {dimension_numbers = #tpu.dot_dimension_numbers<[1], [0], [0], [1], [0, 0, 1, 1], [], []>} : vector<12x16xf32>, vector<16x32xf32>, vector<12x32xf32> -> vector<12x32xf32>
    %189 = vector.extract_strided_slice %168 {offsets = [0, 16], sizes = [12, 16], strides = [1, 1]} : vector<12x96xf32> to vector<12x16xf32>
    %cst_107 = arith.constant 2.500000e-01 : f32
    %190 = vector.broadcast %cst_107 : f32 to vector<12x16xf32>
    %191 = arith.mulf %189, %190 : vector<12x16xf32>
    %192 = vector.extract_strided_slice %168 {offsets = [0, 48], sizes = [12, 16], strides = [1, 1]} : vector<12x96xf32> to vector<12x16xf32>
    %193 = vector.extract_strided_slice %168 {offsets = [0, 80], sizes = [12, 16], strides = [1, 1]} : vector<12x96xf32> to vector<12x16xf32>
    %cst_108 = arith.constant dense<0.000000e+00> : vector<12x12xf32>
    %194 = tpu.matmul %191, %192, %cst_108 {dimension_numbers = #tpu.dot_dimension_numbers<[1], [1], [0], [0], [0, 0, 1, 0], [], []>} : vector<12x16xf32>, vector<12x16xf32>, vector<12x12xf32> -> vector<12x12xf32>
    %195 = arith.addf %194, %13 : vector<12x12xf32>
    %cst_109 = arith.constant dense<0xFF800000> : vector<12xf32>
    %196 = vector.multi_reduction <maximumf>, %195, %cst_109 [1] : vector<12x12xf32> to vector<12xf32>
    %197 = vector.shape_cast %196 : vector<12xf32> to vector<12x1xf32>
    %198 = vector.broadcast %197 : vector<12x1xf32> to vector<12x12xf32>
    %199 = arith.subf %195, %198 : vector<12x12xf32>
    %200 = math.exp %199 : vector<12x12xf32>
    %cst_110 = arith.constant dense<0.000000e+00> : vector<12xf32>
    %201 = vector.multi_reduction <add>, %200, %cst_110 [1] : vector<12x12xf32> to vector<12xf32>
    %202 = vector.shape_cast %201 : vector<12xf32> to vector<12x1xf32>
    %203 = vector.broadcast %202 : vector<12x1xf32> to vector<12x12xf32>
    %204 = arith.divf %200, %203 : vector<12x12xf32>
    %cst_111 = arith.constant dense<0.000000e+00> : vector<12x16xf32>
    %205 = tpu.matmul %204, %193, %cst_111 {dimension_numbers = #tpu.dot_dimension_numbers<[1], [0], [0], [1], [0, 0, 1, 1], [], []>} : vector<12x12xf32>, vector<12x16xf32>, vector<12x16xf32> -> vector<12x16xf32>
    %c1_112 = arith.constant 1 : index
    %c16_113 = arith.constant 16 : index
    %c96_114 = arith.constant 96 : index
    %206 = vector.load %arg3[%c1_112, %c16_113, %c96_114] : memref<3x40x256xf32, #tpu.memory_space<vmem>>, vector<1x16x32xf32>
    %207 = vector.shape_cast %206 : vector<1x16x32xf32> to vector<16x32xf32>
    %cst_115 = arith.constant dense<0.000000e+00> : vector<12x32xf32>
    %208 = tpu.matmul %205, %207, %cst_115 {dimension_numbers = #tpu.dot_dimension_numbers<[1], [0], [0], [1], [0, 0, 1, 1], [], []>} : vector<12x16xf32>, vector<16x32xf32>, vector<12x32xf32> -> vector<12x32xf32>
    %209 = arith.addf %188, %208 : vector<12x32xf32>
    %210 = vector.broadcast %153 : vector<1x32xf32> to vector<12x32xf32>
    %211 = arith.addf %209, %210 : vector<12x32xf32>
    %212 = arith.addf %141, %211 : vector<12x32xf32>
    %cst_116 = arith.constant dense<0.000000e+00> : vector<12xf32>
    %213 = vector.multi_reduction <add>, %212, %cst_116 [1] : vector<12x32xf32> to vector<12xf32>
    %214 = vector.shape_cast %213 : vector<12xf32> to vector<12x1xf32>
    %cst_117 = arith.constant 3.200000e+01 : f32
    %215 = vector.broadcast %cst_117 : f32 to vector<12x1xf32>
    %216 = arith.divf %214, %215 : vector<12x1xf32>
    %217 = vector.broadcast %216 : vector<12x1xf32> to vector<12x32xf32>
    %218 = arith.subf %212, %217 : vector<12x32xf32>
    %219 = arith.mulf %218, %218 : vector<12x32xf32>
    %cst_118 = arith.constant dense<0.000000e+00> : vector<12xf32>
    %220 = vector.multi_reduction <add>, %219, %cst_118 [1] : vector<12x32xf32> to vector<12xf32>
    %221 = vector.shape_cast %220 : vector<12xf32> to vector<12x1xf32>
    %cst_119 = arith.constant 3.200000e+01 : f32
    %222 = vector.broadcast %cst_119 : f32 to vector<12x1xf32>
    %223 = arith.divf %221, %222 : vector<12x1xf32>
    %224 = vector.broadcast %216 : vector<12x1xf32> to vector<12x32xf32>
    %225 = arith.subf %212, %224 : vector<12x32xf32>
    %cst_120 = arith.constant 9.99999974E-6 : f32
    %226 = vector.broadcast %cst_120 : f32 to vector<12x1xf32>
    %227 = arith.addf %223, %226 : vector<12x1xf32>
    %228 = math.rsqrt %227 : vector<12x1xf32>
    %229 = vector.broadcast %228 : vector<12x1xf32> to vector<12x32xf32>
    %230 = arith.mulf %225, %229 : vector<12x32xf32>
    %231 = vector.broadcast %159 : vector<1x32xf32> to vector<12x32xf32>
    %232 = arith.mulf %230, %231 : vector<12x32xf32>
    %233 = vector.broadcast %161 : vector<1x32xf32> to vector<12x32xf32>
    %234 = arith.addf %232, %233 : vector<12x32xf32>
    %cst_121 = arith.constant dense<0.000000e+00> : vector<12x64xf32>
    %235 = tpu.matmul %234, %145, %cst_121 {dimension_numbers = #tpu.dot_dimension_numbers<[1], [0], [0], [1], [0, 0, 1, 1], [], []>} : vector<12x32xf32>, vector<32x64xf32>, vector<12x64xf32> -> vector<12x64xf32>
    %236 = vector.broadcast %155 : vector<1x64xf32> to vector<12x64xf32>
    %237 = arith.addf %235, %236 : vector<12x64xf32>
    %cst_122 = arith.constant 0.000000e+00 : f32
    %238 = vector.broadcast %cst_122 : f32 to vector<12x64xf32>
    %239 = arith.maximumf %237, %238 : vector<12x64xf32>
    %240 = vector.extract_strided_slice %239 {offsets = [0, 0], sizes = [12, 32], strides = [1, 1]} : vector<12x64xf32> to vector<12x32xf32>
    %cst_123 = arith.constant dense<0.000000e+00> : vector<12x32xf32>
    %241 = tpu.matmul %240, %147, %cst_123 {dimension_numbers = #tpu.dot_dimension_numbers<[1], [0], [0], [1], [0, 0, 1, 1], [], []>} : vector<12x32xf32>, vector<32x32xf32>, vector<12x32xf32> -> vector<12x32xf32>
    %242 = vector.extract_strided_slice %239 {offsets = [0, 32], sizes = [12, 32], strides = [1, 1]} : vector<12x64xf32> to vector<12x32xf32>
    %cst_124 = arith.constant dense<0.000000e+00> : vector<12x32xf32>
    %243 = tpu.matmul %242, %149, %cst_124 {dimension_numbers = #tpu.dot_dimension_numbers<[1], [0], [0], [1], [0, 0, 1, 1], [], []>} : vector<12x32xf32>, vector<32x32xf32>, vector<12x32xf32> -> vector<12x32xf32>
    %244 = arith.addf %241, %243 : vector<12x32xf32>
    %245 = vector.broadcast %157 : vector<1x32xf32> to vector<12x32xf32>
    %246 = arith.addf %244, %245 : vector<12x32xf32>
    %247 = arith.addf %234, %246 : vector<12x32xf32>
    %cst_125 = arith.constant dense<0.000000e+00> : vector<12xf32>
    %248 = vector.multi_reduction <add>, %247, %cst_125 [1] : vector<12x32xf32> to vector<12xf32>
    %249 = vector.shape_cast %248 : vector<12xf32> to vector<12x1xf32>
    %cst_126 = arith.constant 3.200000e+01 : f32
    %250 = vector.broadcast %cst_126 : f32 to vector<12x1xf32>
    %251 = arith.divf %249, %250 : vector<12x1xf32>
    %252 = vector.broadcast %251 : vector<12x1xf32> to vector<12x32xf32>
    %253 = arith.subf %247, %252 : vector<12x32xf32>
    %254 = arith.mulf %253, %253 : vector<12x32xf32>
    %cst_127 = arith.constant dense<0.000000e+00> : vector<12xf32>
    %255 = vector.multi_reduction <add>, %254, %cst_127 [1] : vector<12x32xf32> to vector<12xf32>
    %256 = vector.shape_cast %255 : vector<12xf32> to vector<12x1xf32>
    %cst_128 = arith.constant 3.200000e+01 : f32
    %257 = vector.broadcast %cst_128 : f32 to vector<12x1xf32>
    %258 = arith.divf %256, %257 : vector<12x1xf32>
    %259 = vector.broadcast %251 : vector<12x1xf32> to vector<12x32xf32>
    %260 = arith.subf %247, %259 : vector<12x32xf32>
    %cst_129 = arith.constant 9.99999974E-6 : f32
    %261 = vector.broadcast %cst_129 : f32 to vector<12x1xf32>
    %262 = arith.addf %258, %261 : vector<12x1xf32>
    %263 = math.rsqrt %262 : vector<12x1xf32>
    %264 = vector.broadcast %263 : vector<12x1xf32> to vector<12x32xf32>
    %265 = arith.mulf %260, %264 : vector<12x32xf32>
    %266 = vector.broadcast %163 : vector<1x32xf32> to vector<12x32xf32>
    %267 = arith.mulf %265, %266 : vector<12x32xf32>
    %268 = vector.broadcast %165 : vector<1x32xf32> to vector<12x32xf32>
    %269 = arith.addf %267, %268 : vector<12x32xf32>
    %270 = vector.extract_strided_slice %269 {offsets = [0, 0], sizes = [4, 32], strides = [1, 1]} : vector<12x32xf32> to vector<4x32xf32>
    %c2 = arith.constant 2 : index
    %c0_130 = arith.constant 0 : index
    %c0_131 = arith.constant 0 : index
    %271 = vector.load %arg3[%c2, %c0_130, %c0_131] : memref<3x40x256xf32, #tpu.memory_space<vmem>>, vector<1x32x32xf32>
    %272 = vector.shape_cast %271 : vector<1x32x32xf32> to vector<32x32xf32>
    %c2_132 = arith.constant 2 : index
    %c0_133 = arith.constant 0 : index
    %c32_134 = arith.constant 32 : index
    %273 = vector.load %arg3[%c2_132, %c0_133, %c32_134] : memref<3x40x256xf32, #tpu.memory_space<vmem>>, vector<1x32x32xf32>
    %274 = vector.shape_cast %273 : vector<1x32x32xf32> to vector<32x32xf32>
    %c2_135 = arith.constant 2 : index
    %c0_136 = arith.constant 0 : index
    %c64 = arith.constant 64 : index
    %275 = vector.load %arg3[%c2_135, %c0_136, %c64] : memref<3x40x256xf32, #tpu.memory_space<vmem>>, vector<1x32x32xf32>
    %276 = vector.shape_cast %275 : vector<1x32x32xf32> to vector<32x32xf32>
    %c2_137 = arith.constant 2 : index
    %c32_138 = arith.constant 32 : index
    %c0_139 = arith.constant 0 : index
    %277 = vector.load %arg3[%c2_137, %c32_138, %c0_139] : memref<3x40x256xf32, #tpu.memory_space<vmem>>, vector<1x1x32xf32>
    %278 = vector.shape_cast %277 : vector<1x1x32xf32> to vector<1x32xf32>
    %c2_140 = arith.constant 2 : index
    %c32_141 = arith.constant 32 : index
    %c32_142 = arith.constant 32 : index
    %279 = vector.load %arg3[%c2_140, %c32_141, %c32_142] : memref<3x40x256xf32, #tpu.memory_space<vmem>>, vector<1x1x32xf32>
    %280 = vector.shape_cast %279 : vector<1x1x32xf32> to vector<1x32xf32>
    %c2_143 = arith.constant 2 : index
    %c32_144 = arith.constant 32 : index
    %c64_145 = arith.constant 64 : index
    %281 = vector.load %arg3[%c2_143, %c32_144, %c64_145] : memref<3x40x256xf32, #tpu.memory_space<vmem>>, vector<1x1x32xf32>
    %282 = vector.shape_cast %281 : vector<1x1x32xf32> to vector<1x32xf32>
    %cst_146 = arith.constant dense<0.000000e+00> : vector<4x32xf32>
    %283 = tpu.matmul %270, %272, %cst_146 {dimension_numbers = #tpu.dot_dimension_numbers<[1], [0], [0], [1], [0, 0, 1, 1], [], []>} : vector<4x32xf32>, vector<32x32xf32>, vector<4x32xf32> -> vector<4x32xf32>
    %284 = vector.broadcast %278 : vector<1x32xf32> to vector<4x32xf32>
    %285 = arith.addf %283, %284 : vector<4x32xf32>
    %cst_147 = arith.constant 0.000000e+00 : f32
    %286 = vector.broadcast %cst_147 : f32 to vector<4x32xf32>
    %287 = arith.maximumf %285, %286 : vector<4x32xf32>
    %cst_148 = arith.constant dense<0.000000e+00> : vector<4x32xf32>
    %288 = tpu.matmul %287, %274, %cst_148 {dimension_numbers = #tpu.dot_dimension_numbers<[1], [0], [0], [1], [0, 0, 1, 1], [], []>} : vector<4x32xf32>, vector<32x32xf32>, vector<4x32xf32> -> vector<4x32xf32>
    %289 = vector.broadcast %280 : vector<1x32xf32> to vector<4x32xf32>
    %290 = arith.addf %288, %289 : vector<4x32xf32>
    %cst_149 = arith.constant dense<0.000000e+00> : vector<4x32xf32>
    %291 = tpu.matmul %287, %276, %cst_149 {dimension_numbers = #tpu.dot_dimension_numbers<[1], [0], [0], [1], [0, 0, 1, 1], [], []>} : vector<4x32xf32>, vector<32x32xf32>, vector<4x32xf32> -> vector<4x32xf32>
    %292 = vector.broadcast %282 : vector<1x32xf32> to vector<4x32xf32>
    %293 = arith.addf %291, %292 : vector<4x32xf32>
    %cst_150 = arith.constant 2.000000e+01 : f32
    %294 = vector.broadcast %cst_150 : f32 to vector<4x32xf32>
    %295 = arith.cmpf ogt, %293, %294 : vector<4x32xf32>
    %cst_151 = arith.constant 2.000000e+01 : f32
    %296 = vector.broadcast %cst_151 : f32 to vector<4x32xf32>
    %297 = arith.minimumf %293, %296 : vector<4x32xf32>
    %298 = math.exp %297 : vector<4x32xf32>
    %299 = math.log1p %298 : vector<4x32xf32>
    %300 = arith.select %295, %293, %299 : vector<4x32xi1>, vector<4x32xf32>
    %cst_152 = arith.constant 2.000000e+01 : f32
    %301 = vector.broadcast %cst_152 : f32 to vector<4x32xf32>
    %302 = arith.cmpf ogt, %300, %301 : vector<4x32xf32>
    %cst_153 = arith.constant 2.000000e+01 : f32
    %303 = vector.broadcast %cst_153 : f32 to vector<4x32xf32>
    %304 = arith.minimumf %300, %303 : vector<4x32xf32>
    %305 = math.exp %304 : vector<4x32xf32>
    %306 = math.log1p %305 : vector<4x32xf32>
    %307 = arith.select %302, %300, %306 : vector<4x32xi1>, vector<4x32xf32>
    %308 = tpu.concatenate %290, %307 in 0 : vector<4x32xf32>, vector<4x32xf32> -> vector<8x32xf32>
    %c0_154 = arith.constant 0 : index
    %c0_155 = arith.constant 0 : index
    %c0_156 = arith.constant 0 : index
    %309 = vector.load %arg4[%c0_154, %c0_155, %c0_156] : memref<1x8x32xf32, #tpu.memory_space<vmem>>, vector<1x8x32xf32>
    %310 = vector.shape_cast %309 : vector<1x8x32xf32> to vector<8x32xf32>
    %311 = vector.shape_cast %308 : vector<8x32xf32> to vector<1x8x32xf32>
    tpu.vector_store %arg4[%c0_154, %c0_155, %c0_156], %311 {strides = array<i32>} : memref<1x8x32xf32, #tpu.memory_space<vmem>>, vector<1x8x32xf32>,
    return
  }
  func.func @transform_0(%arg0: i32) -> (i32, i32, i32) {
    %c0_i32 = arith.constant 0 : i32
    %c0_i32_0 = arith.constant 0 : i32
    %c0_i32_1 = arith.constant 0 : i32
    return %arg0, %c0_i32, %c0_i32_0 : i32, i32, i32
  }
  func.func @transform_1(%arg0: i32) -> (i32, i32, i32) {
    %c0_i32 = arith.constant 0 : i32
    %c0_i32_0 = arith.constant 0 : i32
    %c0_i32_1 = arith.constant 0 : i32
    return %arg0, %c0_i32, %c0_i32_0 : i32, i32, i32
  }
  func.func @transform_2(%arg0: i32) -> (i32, i32, i32) {
    %c0_i32 = arith.constant 0 : i32
    %c0_i32_0 = arith.constant 0 : i32
    %c0_i32_1 = arith.constant 0 : i32
    %c0_i32_2 = arith.constant 0 : i32
    return %c0_i32, %c0_i32_0, %c0_i32_1 : i32, i32, i32
  }
  func.func @transform_3(%arg0: i32) -> (i32, i32, i32) {
    %c0_i32 = arith.constant 0 : i32
    %c0_i32_0 = arith.constant 0 : i32
    %c0_i32_1 = arith.constant 0 : i32
    return %arg0, %c0_i32, %c0_i32_0 : i32, i32, i32
  }
}

</mosaic_0001>

<llo_original>
// kernel: transformer_model_67_forward.1
$region0: #{transformer_model_67_forward.1}
  #allocation0 [shape = 'u32[]', space=smem, size = 0x4, offset = 0x4, fixed_abs, tag = 'smem constant byte address 0x4 - core index']
  #allocation1 [shape = 'u32[144,128]{1,0:T(1,128)}', space=vmem, size = 0x12000, scoped, tag = 'internal scratch']
  %s0 = inlined_call_operand.hbm [shape: f32[1,4,32], index: 0, kind: input, shape index: {}]
  %s1 = inlined_call_operand.vmem [shape: f32[1,8,32], index: 1, kind: input, shape index: {}]
  %s2 = inlined_call_operand.hbm [shape: f32[3,40,256], index: 2, kind: input, shape index: {}]
  %s3 = inlined_call_operand.vmem [shape: f32[1,8,32], index: 3, kind: output, shape index: {}]
  %s4 = sld [smem:[#allocation0]]
  $region30: #{transformer_model_67_forward.1} parent=0
    _
  %s6 = ssub.s32 1, %s4
  %s7 = scalar_select 0, %s6, %s4
  $region1: #{transformer_model_67_forward.1} parent=0
    #allocation2 [shape = 'u8[2048]{0}', space=vmem, size = 0x800, scoped, tag = 'input window, operand 0, single buffered']
    #allocation3 [shape = 's32[1]{0}', space=sflag, size = 0x4, scoped, tag = 'scoped memory for transformer_model_67_forward.1']
    #allocation4 [shape = 'u8[122880]{0}', space=vmem, size = 0x1e000, scoped, tag = 'input window, operand 2, single buffered']
    #allocation5 [shape = 's32[1]{0}', space=sflag, size = 0x4, scoped, tag = 'scoped memory for transformer_model_67_forward.1']
    %8 = vsyncpa [#allocation3], 0
    %9 = vsyncpa [#allocation5], 0
    // Predicated region
    $region2: #{transformer_model_67_forward.1} parent=1 // pred_check
      _
    $region3: #{transformer_model_67_forward.1} parent=1 // pred_check_branch
      %11 = sbr.rel (0) target = $region5
    $region4: #{transformer_model_67_forward.1} parent=1 // pred_region
      %s13 = ssub.s32 64, 64
      %14 = vsyncadd [#allocation3], %s13
      %s16 = sshll.u32 [#allocation2], 4
      %s17 = int_to_ptr.vmem [resolvable:$true] %s16
      %19 = dma.hbm_to_vmem [thread:$0]  %s0, 64, %s17, [#allocation3]
    $region5: #{transformer_model_67_forward.1} parent=1 // pred_fallthru
      _
    // Predicated region
    $region6: #{transformer_model_67_forward.1} parent=1 // pred_check
      _
    $region7: #{transformer_model_67_forward.1} parent=1 // pred_check_branch
      %21 = sbr.rel (0) target = $region9
    $region8: #{transformer_model_67_forward.1} parent=1 // pred_region
      _
    $region9: #{transformer_model_67_forward.1} parent=1 // pred_fallthru
      _
    // Predicated region
    $region10: #{transformer_model_67_forward.1} parent=1 // pred_check
      _
    $region11: #{transformer_model_67_forward.1} parent=1 // pred_check_branch
      %23 = sbr.rel (0) target = $region13
    $region12: #{transformer_model_67_forward.1} parent=1 // pred_region
      %s25 = ssub.s32 3840, 3840
      %26 = vsyncadd [#allocation5], %s25
      %s27 = sshll.u32 [#allocation4], 4
      %s28 = int_to_ptr.vmem [resolvable:$true] %s27
      %33 = dma.hbm_to_vmem [thread:$0]  %s2, 3840, %s28, [#allocation5], 256, 256, 16
    $region13: #{transformer_model_67_forward.1} parent=1 // pred_fallthru
      _
    // Predicated region
    $region14: #{transformer_model_67_forward.1} parent=1 // pred_check
      _
    $region15: #{transformer_model_67_forward.1} parent=1 // pred_check_branch
      %35 = sbr.rel (0) target = $region17
    $region16: #{transformer_model_67_forward.1} parent=1 // pred_region
      %36 = dma.done [#allocation3], 64
    $region17: #{transformer_model_67_forward.1} parent=1 // pred_fallthru
      _
    // Predicated region
    $region18: #{transformer_model_67_forward.1} parent=1 // pred_check
      _
    $region19: #{transformer_model_67_forward.1} parent=1 // pred_check_branch
      %38 = sbr.rel (0) target = $region21
    $region20: #{transformer_model_67_forward.1} parent=1 // pred_region
      %39 = dma.done [#allocation5], 3840
    $region21: #{transformer_model_67_forward.1} parent=1 // pred_fallthru
      _
    %v40 = vld [vmem:[#allocation2] sm:$0xf]
    %v41 = vld [vmem:[%s1] sm:$0xff]
    %v43 = vrot.slane %v41, 4
    %vm45 = vcmask 1043456
    %v46 = vsel %vm45, %v40, %v43
    %v47 = vlaneseq
    %v48 = vshrl.u32 %v47, 7
    %v49 = vadd.s32 %v48, 8
    %v50 = vlaneseq
    %v51 = vand.u32 %v50, 127
    %vm52 = vcmp.lt.s32.totalorder %v51, 4
    %vm53 = vcmp.eq.s32.totalorder %v48, %v51
    %vm54 = vcmp.eq.s32.totalorder %v49, %v51
    %vm55 = vmor %vm52, %vm53
    %vm56 = vmor %vm52, %vm54
    %v57 = vsel %vm55, 0.0, -1e+30
    %v58 = vsel %vm56, 0.0, -1e+30
    %v59 = vld [vmem:[#allocation4] sm:$0xff]
    %v60 = vld [vmem:[#allocation4 + $0x10] sm:$0xff]
    %v61 = vld [vmem:[#allocation4 + $0x20] sm:$0xff]
    %v62 = vld [vmem:[#allocation4 + $0x30] sm:$0xff]
    %v63 = vld [vmem:[#allocation4 + $0x8] sm:$0xff]
    %v64 = vld [vmem:[#allocation4 + $0x18] sm:$0xff]
    %v65 = vld [vmem:[#allocation4 + $0x28] sm:$0xff]
    %v66 = vld [vmem:[#allocation4 + $0x38] sm:$0xff]
    %v67 = vld [vmem:[#allocation4 + $0x40] ss:$0 sm:$0xff]
    %v68 = vld [vmem:[#allocation4 + $0x41] ss:$0 sm:$0xff]
    %v69 = vld [vmem:[#allocation4 + $0x42] ss:$0 sm:$0xff]
    %v70 = vld [vmem:[#allocation4 + $0x43] ss:$0 sm:$0xff]
    %v71 = vld [vmem:[#allocation4 + $0x44] ss:$0 sm:$0xff]
    %v72 = vld [vmem:[#allocation4 + $0x45] ss:$0 sm:$0xff]
    %v73 = vld [vmem:[#allocation4 + $0x46] ss:$0 sm:$0xff]
    %v74 = vld [vmem:[#allocation4 + $0x47] ss:$0 sm:$0xff]
    %vm75 = vcmask 261120
    %v77 = vsel %vm75, %v46, 0
    %v79 = vsel %vm75, %v43, 0
    %81 = vmatprep.subr.mxu0 0.0
    %82 = vmatpush1.msra.mxu0 %v59
    %83 = vmatprep.subr.mxu0 0.0
    %84 = vmatpush1.msra.mxu0 %v60
    %85 = vmatprep.subr.mxu0 0.0
    %86 = vmatpush1.msra.mxu0 %v61
    %87 = vmatprep.subr.mxu0 0.0
    %88 = vmatpush1.msra.mxu0 %v62
    %89 = vmatprep.subr.mxu0 0.0
    %90 = vmatpush1.msra.mxu0 0.0
    %91 = vmatprep.subr.mxu0 0.0
    %92 = vmatpush1.msra.mxu0 0.0
    %93 = vmatprep.subr.mxu0 0.0
    %94 = vmatpush1.msra.mxu0 0.0
    %95 = vmatprep.subr.mxu0 0.0
    %96 = vmatpush1.msra.mxu0 0.0
    %97 = vmatprep.subr.mxu0 0.0
    %98 = vmatpush1.msra.mxu0 0.0
    %99 = vmatprep.subr.mxu0 0.0
    %100 = vmatpush1.msra.mxu0 0.0
    %101 = vmatprep.subr.mxu0 0.0
    %102 = vmatpush1.msra.mxu0 0.0
    %103 = vmatprep.subr.mxu0 0.0
    %104 = vmatpush1.msra.mxu0 0.0
    %105 = vmatprep.subr.mxu0 0.0
    %106 = vmatpush1.msra.mxu0 0.0
    %107 = vmatprep.subr.mxu0 0.0
    %108 = vmatpush1.msra.mxu0 0.0
    %109 = vmatprep.subr.mxu0 0.0
    %110 = vmatpush1.msra.mxu0 0.0
    %111 = vmatprep.subr.mxu0 0.0
    %112 = vmatpush1.msra.mxu0 0.0
    %113 = vmatprep.subr.mxu0 0.0
    %114 = vmatpush1.msra.mxu0 0.0
    %115 = vmatprep.subr.mxu0 0.0
    %116 = vmatpush1.msra.mxu0 0.0
    %117 = vmatprep.subr.mxu0 0.0
    %118 = vmatpush1.msra.mxu0 0.0
    %119 = vmatprep.subr.mxu0 0.0
    %120 = vmatpush1.msra.mxu0 0.0
    %121 = vmatprep.subr.mxu0 0.0
    %122 = vmatpush1.msra.mxu0 0.0
    %123 = vmatprep.subr.mxu0 0.0
    %124 = vmatpush1.msra.mxu0 0.0
    %125 = vmatprep.subr.mxu0 0.0
    %126 = vmatpush1.msra.mxu0 0.0
    %127 = vmatprep.subr.mxu0 0.0
    %128 = vmatpush1.msra.mxu0 0.0
    %129 = vmatprep.subr.mxu0 0.0
    %130 = vmatpush1.msra.mxu0 0.0
    %131 = vmatprep.subr.mxu0 0.0
    %132 = vmatpush1.msra.mxu0 0.0
    %133 = vmatprep.subr.mxu0 0.0
    %134 = vmatpush1.msra.mxu0 0.0
    %135 = vmatprep.subr.mxu0 0.0
    %136 = vmatpush1.msra.mxu0 0.0
    %137 = vmatprep.subr.mxu0 0.0
    %138 = vmatpush1.msra.mxu0 0.0
    %139 = vmatprep.subr.mxu0 0.0
    %140 = vmatpush1.msra.mxu0 0.0
    %141 = vmatprep.subr.mxu0 0.0
    %142 = vmatpush1.msra.mxu0 0.0
    %143 = vmatprep.subr.mxu0 0.0
    %144 = vmatpush1.msra.mxu0 0.0
    %145 = vmatprep.mubr.f32.mxu0 0.0
    %146 = vmatmul.mubr.f32.gmra.mrb[0].mxu0 %v77
    %v147 = vpop.f32.mrb[0].mxu0
    %v148 = vadd.f32 %v67, %v147
    %v149 = vpop.f32.mrb[0].mxu0
    %150 = vmatprep.mubr.f32.mxu0 0.0
    %151 = vmatmul.mubr.f32.gmra.mrb[0].mxu0 %v79
    %v152 = vpop.f32.mrb[0].mxu0
    %v153 = vadd.f32 %v67, %v152
    %v154 = vpop.f32.mrb[0].mxu0
    %155 = vdwg.mxu0
    %v156 = vmul.f32 %v148, 0.25
    %v157 = vmul.f32 %v153, 0.25
    %160 = vrot.lane.b32.xlu0 %v148, 96
    %v161 = vpop.permute.xlu0 %160
    %162 = vrot.lane.b32.xlu0 %v153, 96
    %v163 = vpop.permute.xlu0 %162
    %vm164 = vcmask 130048
    %v166 = vsel %vm164, %v156, 0
    %v169 = vsel %vm164, %v157, 0
    %v171 = vsel %vm164, %v161, 0
    %v173 = vsel %vm164, %v163, 0
    %175 = vmatprep.subr.mxu0 0.0
    %176 = vmatpush1.xpose.msra.mxu0 %v171
    %177 = vmatprep.subr.mxu0 0.0
    %178 = vmatpush1.xpose.msra.mxu0 %v173
    %179 = vmatprep.subr.mxu0 0.0
    %180 = vmatpush1.xpose.msra.mxu0 0.0
    %181 = vmatprep.subr.mxu0 0.0
    %182 = vmatpush1.xpose.msra.mxu0 0.0
    %183 = vmatprep.subr.mxu0 0.0
    %184 = vmatpush1.xpose.msra.mxu0 0.0
    %185 = vmatprep.subr.mxu0 0.0
    %186 = vmatpush1.xpose.msra.mxu0 0.0
    %187 = vmatprep.subr.mxu0 0.0
    %188 = vmatpush1.xpose.msra.mxu0 0.0
    %189 = vmatprep.subr.mxu0 0.0
    %190 = vmatpush1.xpose.msra.mxu0 0.0
    %191 = vmatprep.subr.mxu0 0.0
    %192 = vmatpush1.xpose.msra.mxu0 0.0
    %193 = vmatprep.subr.mxu0 0.0
    %194 = vmatpush1.xpose.msra.mxu0 0.0
    %195 = vmatprep.subr.mxu0 0.0
    %196 = vmatpush1.xpose.msra.mxu0 0.0
    %197 = vmatprep.subr.mxu0 0.0
    %198 = vmatpush1.xpose.msra.mxu0 0.0
    %199 = vmatprep.subr.mxu0 0.0
    %200 = vmatpush1.xpose.msra.mxu0 0.0
    %201 = vmatprep.subr.mxu0 0.0
    %202 = vmatpush1.xpose.msra.mxu0 0.0
    %203 = vmatprep.subr.mxu0 0.0
    %204 = vmatpush1.xpose.msra.mxu0 0.0
    %205 = vmatprep.subr.mxu0 0.0
    %206 = vmatpush1.xpose.msra.mxu0 0.0
    %207 = vmatprep.subr.mxu0 0.0
    %208 = vmatpush1.xpose.msra.mxu0 0.0
    %209 = vmatprep.subr.mxu0 0.0
    %210 = vmatpush1.xpose.msra.mxu0 0.0
    %211 = vmatprep.subr.mxu0 0.0
    %212 = vmatpush1.xpose.msra.mxu0 0.0
    %213 = vmatprep.subr.mxu0 0.0
    %214 = vmatpush1.xpose.msra.mxu0 0.0
    %215 = vmatprep.subr.mxu0 0.0
    %216 = vmatpush1.xpose.msra.mxu0 0.0
    %217 = vmatprep.subr.mxu0 0.0
    %218 = vmatpush1.xpose.msra.mxu0 0.0
    %219 = vmatprep.subr.mxu0 0.0
    %220 = vmatpush1.xpose.msra.mxu0 0.0
    %221 = vmatprep.subr.mxu0 0.0
    %222 = vmatpush1.xpose.msra.mxu0 0.0
    %223 = vmatprep.subr.mxu0 0.0
    %224 = vmatpush1.xpose.msra.mxu0 0.0
    %225 = vmatprep.subr.mxu0 0.0
    %226 = vmatpush1.xpose.msra.mxu0 0.0
    %227 = vmatprep.subr.mxu0 0.0
    %228 = vmatpush1.xpose.msra.mxu0 0.0
    %229 = vmatprep.subr.mxu0 0.0
    %230 = vmatpush1.xpose.msra.mxu0 0.0
    %231 = vmatprep.subr.mxu0 0.0
    %232 = vmatpush1.xpose.msra.mxu0 0.0
    %233 = vmatprep.subr.mxu0 0.0
    %234 = vmatpush1.xpose.msra.mxu0 0.0
    %235 = vmatprep.subr.mxu0 0.0
    %236 = vmatpush1.xpose.msra.mxu0 0.0
    %237 = vmatprep.subr.mxu0 0.0
    %238 = vmatpush1.xpose.msra.mxu0 0.0
    %239 = vmatprep.mubr.f32.mxu0 0.0
    %240 = vmatmul.mubr.f32.gmra.mrb[0].mxu0 %v166
    %v241 = vpop.f32.mrb[0].mxu0
    %v242 = vadd.f32 %v57, %v241
    %v243 = vpop.f32.mrb[0].mxu0
    %244 = vmatprep.mubr.f32.mxu0 0.0
    %245 = vmatmul.mubr.f32.gmra.mrb[0].mxu0 %v169
    %v246 = vpop.f32.mrb[0].mxu0
    %v247 = vadd.f32 %v58, %v246
    %v248 = vpop.f32.mrb[0].mxu0
    %249 = vdwg.mxu0
    %vm250 = vcmask 97280
    %v251 = vsel %vm250, %v242, -inf
    %252 = vmax.xlane.f32.xlu0 %v251
    %v253 = vpop.xlane.xlu0 %252
    %vm254 = vcmask 93184
    %v255 = vsel %vm254, %v247, -inf
    %256 = vmax.xlane.f32.xlu0 %v255
    %v257 = vpop.xlane.xlu0 %256
    %v258 = vsub.f32 %v242, %v253
    %v259 = vsub.f32 %v247, %v257
    %v260 = vmul.f32 %v258, 1.442695
    %v261 = vpow.pop %v260
    %v262 = vmul.f32 %v259, 1.442695
    %v263 = vpow.pop %v262
    %v264 = vsel %vm250, %v261, 0.0
    %265 = vadd.xlane.f32.xlu0 %v264
    %v266 = vpop.xlane.xlu0 %265
    %v267 = vsel %vm254, %v263, 0.0
    %268 = vadd.xlane.f32.xlu0 %v267
    %v269 = vpop.xlane.xlu0 %268
    %v270 = vrcp.pop %v266
    %v271 = vmul.f32 %v261, %v270
    %v272 = vrcp.pop %v269
    %v273 = vmul.f32 %v263, %v272
    %274 = vrot.lane.b32.xlu0 %v148, 64
    %v275 = vpop.permute.xlu0 %274
    %276 = vrot.lane.b32.xlu0 %v153, 64
    %v277 = vpop.permute.xlu0 %276
    %v280 = vsel %vm250, %v271, 0
    %v283 = vsel %vm250, %v273, 0
    %v285 = vsel %vm45, %v277, 0
    %287 = vmatprep.subr.mxu0 0.0
    %288 = vmatpush1.msra.mxu0 %v275
    %289 = vmatprep.subr.mxu0 0.0
    %290 = vmatpush1.msra.mxu0 %v285
    %291 = vmatprep.subr.mxu0 0.0
    %292 = vmatpush1.msra.mxu0 0.0
    %293 = vmatprep.subr.mxu0 0.0
    %294 = vmatpush1.msra.mxu0 0.0
    %295 = vmatprep.subr.mxu0 0.0
    %296 = vmatpush1.msra.mxu0 0.0
    %297 = vmatprep.subr.mxu0 0.0
    %298 = vmatpush1.msra.mxu0 0.0
    %299 = vmatprep.subr.mxu0 0.0
    %300 = vmatpush1.msra.mxu0 0.0
    %301 = vmatprep.subr.mxu0 0.0
    %302 = vmatpush1.msra.mxu0 0.0
    %303 = vmatprep.subr.mxu0 0.0
    %304 = vmatpush1.msra.mxu0 0.0
    %305 = vmatprep.subr.mxu0 0.0
    %306 = vmatpush1.msra.mxu0 0.0
    %307 = vmatprep.subr.mxu0 0.0
    %308 = vmatpush1.msra.mxu0 0.0
    %309 = vmatprep.subr.mxu0 0.0
    %310 = vmatpush1.msra.mxu0 0.0
    %311 = vmatprep.subr.mxu0 0.0
    %312 = vmatpush1.msra.mxu0 0.0
    %313 = vmatprep.subr.mxu0 0.0
    %314 = vmatpush1.msra.mxu0 0.0
    %315 = vmatprep.subr.mxu0 0.0
    %316 = vmatpush1.msra.mxu0 0.0
    %317 = vmatprep.subr.mxu0 0.0
    %318 = vmatpush1.msra.mxu0 0.0
    %319 = vmatprep.subr.mxu0 0.0
    %320 = vmatpush1.msra.mxu0 0.0
    %321 = vmatprep.subr.mxu0 0.0
    %322 = vmatpush1.msra.mxu0 0.0
    %323 = vmatprep.subr.mxu0 0.0
    %324 = vmatpush1.msra.mxu0 0.0
    %325 = vmatprep.subr.mxu0 0.0
    %326 = vmatpush1.msra.mxu0 0.0
    %327 = vmatprep.subr.mxu0 0.0
    %328 = vmatpush1.msra.mxu0 0.0
    %329 = vmatprep.subr.mxu0 0.0
    %330 = vmatpush1.msra.mxu0 0.0
    %331 = vmatprep.subr.mxu0 0.0
    %332 = vmatpush1.msra.mxu0 0.0
    %333 = vmatprep.subr.mxu0 0.0
    %334 = vmatpush1.msra.mxu0 0.0
    %335 = vmatprep.subr.mxu0 0.0
    %336 = vmatpush1.msra.mxu0 0.0
    %337 = vmatprep.subr.mxu0 0.0
    %338 = vmatpush1.msra.mxu0 0.0
    %339 = vmatprep.subr.mxu0 0.0
    %340 = vmatpush1.msra.mxu0 0.0
    %341 = vmatprep.subr.mxu0 0.0
    %342 = vmatpush1.msra.mxu0 0.0
    %343 = vmatprep.subr.mxu0 0.0
    %344 = vmatpush1.msra.mxu0 0.0
    %345 = vmatprep.subr.mxu0 0.0
    %346 = vmatpush1.msra.mxu0 0.0
    %347 = vmatprep.subr.mxu0 0.0
    %348 = vmatpush1.msra.mxu0 0.0
    %349 = vmatprep.subr.mxu0 0.0
    %350 = vmatpush1.msra.mxu0 0.0
    %351 = vmatprep.mubr.f32.mxu0 0.0
    %352 = vmatmul.mubr.f32.gmra.mrb[0].mxu0 %v280
    %v353 = vpop.f32.mrb[0].mxu0
    %v354 = vadd.f32 0.0, %v353
    %v355 = vpop.f32.mrb[0].mxu0
    %356 = vmatprep.mubr.f32.mxu0 0.0
    %357 = vmatmul.mubr.f32.gmra.mrb[0].mxu0 %v283
    %v358 = vpop.f32.mrb[0].mxu0
    %v359 = vadd.f32 0.0, %v358
    %v360 = vpop.f32.mrb[0].mxu0
    %361 = vdwg.mxu0
    %v362 = vld [vmem:[#allocation4] sm:$0xff]
    %v363 = vld [vmem:[#allocation4 + $0x10] sm:$0xff]
    %364 = vrot.lane.b32.xlu0 %v156, 112
    %v365 = vpop.permute.xlu0 %364
    %366 = vrot.lane.b32.xlu0 %v157, 112
    %v367 = vpop.permute.xlu0 %366
    %368 = vrot.lane.b32.xlu0 %v148, 80
    %v369 = vpop.permute.xlu0 %368
    %370 = vrot.lane.b32.xlu0 %v153, 80
    %v371 = vpop.permute.xlu0 %370
    %v372 = vsel %vm164, %v365, 0
    %v374 = vsel %vm164, %v367, 0
    %v376 = vsel %vm164, %v369, 0
    %v378 = vsel %vm164, %v371, 0
    %380 = vmatprep.subr.mxu0 0.0
    %381 = vmatpush1.xpose.msra.mxu0 %v376
    %382 = vmatprep.subr.mxu0 0.0
    %383 = vmatpush1.xpose.msra.mxu0 %v378
    %384 = vmatprep.subr.mxu0 0.0
    %385 = vmatpush1.xpose.msra.mxu0 0.0
    %386 = vmatprep.subr.mxu0 0.0
    %387 = vmatpush1.xpose.msra.mxu0 0.0
    %388 = vmatprep.subr.mxu0 0.0
    %389 = vmatpush1.xpose.msra.mxu0 0.0
    %390 = vmatprep.subr.mxu0 0.0
    %391 = vmatpush1.xpose.msra.mxu0 0.0
    %392 = vmatprep.subr.mxu0 0.0
    %393 = vmatpush1.xpose.msra.mxu0 0.0
    %394 = vmatprep.subr.mxu0 0.0
    %395 = vmatpush1.xpose.msra.mxu0 0.0
    %396 = vmatprep.subr.mxu0 0.0
    %397 = vmatpush1.xpose.msra.mxu0 0.0
    %398 = vmatprep.subr.mxu0 0.0
    %399 = vmatpush1.xpose.msra.mxu0 0.0
    %400 = vmatprep.subr.mxu0 0.0
    %401 = vmatpush1.xpose.msra.mxu0 0.0
    %402 = vmatprep.subr.mxu0 0.0
    %403 = vmatpush1.xpose.msra.mxu0 0.0
    %404 = vmatprep.subr.mxu0 0.0
    %405 = vmatpush1.xpose.msra.mxu0 0.0
    %406 = vmatprep.subr.mxu0 0.0
    %407 = vmatpush1.xpose.msra.mxu0 0.0
    %408 = vmatprep.subr.mxu0 0.0
    %409 = vmatpush1.xpose.msra.mxu0 0.0
    %410 = vmatprep.subr.mxu0 0.0
    %411 = vmatpush1.xpose.msra.mxu0 0.0
    %412 = vmatprep.subr.mxu0 0.0
    %413 = vmatpush1.xpose.msra.mxu0 0.0
    %414 = vmatprep.subr.mxu0 0.0
    %415 = vmatpush1.xpose.msra.mxu0 0.0
    %416 = vmatprep.subr.mxu0 0.0
    %417 = vmatpush1.xpose.msra.mxu0 0.0
    %418 = vmatprep.subr.mxu0 0.0
    %419 = vmatpush1.xpose.msra.mxu0 0.0
    %420 = vmatprep.subr.mxu0 0.0
    %421 = vmatpush1.xpose.msra.mxu0 0.0
    %422 = vmatprep.subr.mxu0 0.0
    %423 = vmatpush1.xpose.msra.mxu0 0.0
    %424 = vmatprep.subr.mxu0 0.0
    %425 = vmatpush1.xpose.msra.mxu0 0.0
    %426 = vmatprep.subr.mxu0 0.0
    %427 = vmatpush1.xpose.msra.mxu0 0.0
    %428 = vmatprep.subr.mxu0 0.0
    %429 = vmatpush1.xpose.msra.mxu0 0.0
    %430 = vmatprep.subr.mxu0 0.0
    %431 = vmatpush1.xpose.msra.mxu0 0.0
    %432 = vmatprep.subr.mxu0 0.0
    %433 = vmatpush1.xpose.msra.mxu0 0.0
    %434 = vmatprep.subr.mxu0 0.0
    %435 = vmatpush1.xpose.msra.mxu0 0.0
    %436 = vmatprep.subr.mxu0 0.0
    %437 = vmatpush1.xpose.msra.mxu0 0.0
    %438 = vmatprep.subr.mxu0 0.0
    %439 = vmatpush1.xpose.msra.mxu0 0.0
    %440 = vmatprep.subr.mxu0 0.0
    %441 = vmatpush1.xpose.msra.mxu0 0.0
    %442 = vmatprep.subr.mxu0 0.0
    %443 = vmatpush1.xpose.msra.mxu0 0.0
    %444 = vmatprep.mubr.f32.mxu0 0.0
    %445 = vmatmul.mubr.f32.gmra.mrb[0].mxu0 %v372
    %v446 = vpop.f32.mrb[0].mxu0
    %v447 = vadd.f32 %v57, %v446
    %v448 = vpop.f32.mrb[0].mxu0
    %449 = vmatprep.mubr.f32.mxu0 0.0
    %450 = vmatmul.mubr.f32.gmra.mrb[0].mxu0 %v374
    %v451 = vpop.f32.mrb[0].mxu0
    %v452 = vadd.f32 %v58, %v451
    %v453 = vpop.f32.mrb[0].mxu0
    %454 = vdwg.mxu0
    %v455 = vsel %vm250, %v447, -inf
    %456 = vmax.xlane.f32.xlu0 %v455
    %v457 = vpop.xlane.xlu0 %456
    %v458 = vsel %vm254, %v452, -inf
    %459 = vmax.xlane.f32.xlu0 %v458
    %v460 = vpop.xlane.xlu0 %459
    %v461 = vsub.f32 %v447, %v457
    %v462 = vsub.f32 %v452, %v460
    %v463 = vmul.f32 %v461, 1.442695
    %v464 = vpow.pop %v463
    %v465 = vmul.f32 %v462, 1.442695
    %v466 = vpow.pop %v465
    %v467 = vsel %vm250, %v464, 0.0
    %468 = vadd.xlane.f32.xlu0 %v467
    %v469 = vpop.xlane.xlu0 %468
    %v470 = vsel %vm254, %v466, 0.0
    %471 = vadd.xlane.f32.xlu0 %v470
    %v472 = vpop.xlane.xlu0 %471
    %v473 = vrcp.pop %v469
    %v474 = vmul.f32 %v464, %v473
    %v475 = vrcp.pop %v472
    %v476 = vmul.f32 %v466, %v475
    %477 = vrot.lane.b32.xlu0 %v148, 48
    %v478 = vpop.permute.xlu0 %477
    %479 = vrot.lane.b32.xlu0 %v153, 48
    %v480 = vpop.permute.xlu0 %479
    %v483 = vsel %vm250, %v474, 0
    %v486 = vsel %vm250, %v476, 0
    %v488 = vsel %vm45, %v480, 0
    %490 = vmatprep.subr.mxu0 0.0
    %491 = vmatpush1.msra.mxu0 %v478
    %492 = vmatprep.subr.mxu0 0.0
    %493 = vmatpush1.msra.mxu0 %v488
    %494 = vmatprep.subr.mxu0 0.0
    %495 = vmatpush1.msra.mxu0 0.0
    %496 = vmatprep.subr.mxu0 0.0
    %497 = vmatpush1.msra.mxu0 0.0
    %498 = vmatprep.subr.mxu0 0.0
    %499 = vmatpush1.msra.mxu0 0.0
    %500 = vmatprep.subr.mxu0 0.0
    %501 = vmatpush1.msra.mxu0 0.0
    %502 = vmatprep.subr.mxu0 0.0
    %503 = vmatpush1.msra.mxu0 0.0
    %504 = vmatprep.subr.mxu0 0.0
    %505 = vmatpush1.msra.mxu0 0.0
    %506 = vmatprep.subr.mxu0 0.0
    %507 = vmatpush1.msra.mxu0 0.0
    %508 = vmatprep.subr.mxu0 0.0
    %509 = vmatpush1.msra.mxu0 0.0
    %510 = vmatprep.subr.mxu0 0.0
    %511 = vmatpush1.msra.mxu0 0.0
    %512 = vmatprep.subr.mxu0 0.0
    %513 = vmatpush1.msra.mxu0 0.0
    %514 = vmatprep.subr.mxu0 0.0
    %515 = vmatpush1.msra.mxu0 0.0
    %516 = vmatprep.subr.mxu0 0.0
    %517 = vmatpush1.msra.mxu0 0.0
    %518 = vmatprep.subr.mxu0 0.0
    %519 = vmatpush1.msra.mxu0 0.0
    %520 = vmatprep.subr.mxu0 0.0
    %521 = vmatpush1.msra.mxu0 0.0
    %522 = vmatprep.subr.mxu0 0.0
    %523 = vmatpush1.msra.mxu0 0.0
    %524 = vmatprep.subr.mxu0 0.0
    %525 = vmatpush1.msra.mxu0 0.0
    %526 = vmatprep.subr.mxu0 0.0
    %527 = vmatpush1.msra.mxu0 0.0
    %528 = vmatprep.subr.mxu0 0.0
    %529 = vmatpush1.msra.mxu0 0.0
    %530 = vmatprep.subr.mxu0 0.0
    %531 = vmatpush1.msra.mxu0 0.0
    %532 = vmatprep.subr.mxu0 0.0
    %533 = vmatpush1.msra.mxu0 0.0
    %534 = vmatprep.subr.mxu0 0.0
    %535 = vmatpush1.msra.mxu0 0.0
    %536 = vmatprep.subr.mxu0 0.0
    %537 = vmatpush1.msra.mxu0 0.0
    %538 = vmatprep.subr.mxu0 0.0
    %539 = vmatpush1.msra.mxu0 0.0
    %540 = vmatprep.subr.mxu0 0.0
    %541 = vmatpush1.msra.mxu0 0.0
    %542 = vmatprep.subr.mxu0 0.0
    %543 = vmatpush1.msra.mxu0 0.0
    %544 = vmatprep.subr.mxu0 0.0
    %545 = vmatpush1.msra.mxu0 0.0
    %546 = vmatprep.subr.mxu0 0.0
    %547 = vmatpush1.msra.mxu0 0.0
    %548 = vmatprep.subr.mxu0 0.0
    %549 = vmatpush1.msra.mxu0 0.0
    %550 = vmatprep.subr.mxu0 0.0
    %551 = vmatpush1.msra.mxu0 0.0
    %552 = vmatprep.subr.mxu0 0.0
    %553 = vmatpush1.msra.mxu0 0.0
    %554 = vmatprep.mubr.f32.mxu0 0.0
    %555 = vmatmul.mubr.f32.gmra.mrb[0].mxu0 %v483
    %v556 = vpop.f32.mrb[0].mxu0
    %v557 = vadd.f32 0.0, %v556
    %v558 = vpop.f32.mrb[0].mxu0
    %559 = vmatprep.mubr.f32.mxu0 0.0
    %560 = vmatmul.mubr.f32.gmra.mrb[0].mxu0 %v486
    %v561 = vpop.f32.mrb[0].mxu0
    %v562 = vadd.f32 0.0, %v561
    %v563 = vpop.f32.mrb[0].mxu0
    %564 = vdwg.mxu0
    %567 = vrot.lane.b32.xlu0 %v61, 32
    %v568 = vpop.permute.xlu0 %567
    %569 = vrot.lane.b32.xlu0 %v62, 32
    %v570 = vpop.permute.xlu0 %569
    %v574 = vsel %vm164, %v557, 0
    %v577 = vsel %vm164, %v562, 0
    %579 = vmatprep.subr.mxu0 0.0
    %580 = vmatpush1.msra.mxu0 %v568
    %581 = vmatprep.subr.mxu0 0.0
    %582 = vmatpush1.msra.mxu0 %v570
    %583 = vmatprep.subr.mxu0 0.0
    %584 = vmatpush1.msra.mxu0 0.0
    %585 = vmatprep.subr.mxu0 0.0
    %586 = vmatpush1.msra.mxu0 0.0
    %587 = vmatprep.subr.mxu0 0.0
    %588 = vmatpush1.msra.mxu0 0.0
    %589 = vmatprep.subr.mxu0 0.0
    %590 = vmatpush1.msra.mxu0 0.0
    %591 = vmatprep.subr.mxu0 0.0
    %592 = vmatpush1.msra.mxu0 0.0
    %593 = vmatprep.subr.mxu0 0.0
    %594 = vmatpush1.msra.mxu0 0.0
    %595 = vmatprep.subr.mxu0 0.0
    %596 = vmatpush1.msra.mxu0 0.0
    %597 = vmatprep.subr.mxu0 0.0
    %598 = vmatpush1.msra.mxu0 0.0
    %599 = vmatprep.subr.mxu0 0.0
    %600 = vmatpush1.msra.mxu0 0.0
    %601 = vmatprep.subr.mxu0 0.0
    %602 = vmatpush1.msra.mxu0 0.0
    %603 = vmatprep.subr.mxu0 0.0
    %604 = vmatpush1.msra.mxu0 0.0
    %605 = vmatprep.subr.mxu0 0.0
    %606 = vmatpush1.msra.mxu0 0.0
    %607 = vmatprep.subr.mxu0 0.0
    %608 = vmatpush1.msra.mxu0 0.0
    %609 = vmatprep.subr.mxu0 0.0
    %610 = vmatpush1.msra.mxu0 0.0
    %611 = vmatprep.subr.mxu0 0.0
    %612 = vmatpush1.msra.mxu0 0.0
    %613 = vmatprep.subr.mxu0 0.0
    %614 = vmatpush1.msra.mxu0 0.0
    %615 = vmatprep.subr.mxu0 0.0
    %616 = vmatpush1.msra.mxu0 0.0
    %617 = vmatprep.subr.mxu0 0.0
    %618 = vmatpush1.msra.mxu0 0.0
    %619 = vmatprep.subr.mxu0 0.0
    %620 = vmatpush1.msra.mxu0 0.0
    %621 = vmatprep.subr.mxu0 0.0
    %622 = vmatpush1.msra.mxu0 0.0
    %623 = vmatprep.subr.mxu0 0.0
    %624 = vmatpush1.msra.mxu0 0.0
    %625 = vmatprep.subr.mxu0 0.0
    %626 = vmatpush1.msra.mxu0 0.0
    %627 = vmatprep.subr.mxu0 0.0
    %628 = vmatpush1.msra.mxu0 0.0
    %629 = vmatprep.subr.mxu0 0.0
    %630 = vmatpush1.msra.mxu0 0.0
    %631 = vmatprep.subr.mxu0 0.0
    %632 = vmatpush1.msra.mxu0 0.0
    %633 = vmatprep.subr.mxu0 0.0
    %634 = vmatpush1.msra.mxu0 0.0
    %635 = vmatprep.subr.mxu0 0.0
    %636 = vmatpush1.msra.mxu0 0.0
    %637 = vmatprep.subr.mxu0 0.0
    %638 = vmatpush1.msra.mxu0 0.0
    %639 = vmatprep.subr.mxu0 0.0
    %640 = vmatpush1.msra.mxu0 0.0
    %641 = vmatprep.subr.mxu0 0.0
    %642 = vmatpush1.msra.mxu0 0.0
    %643 = vmatprep.mubr.f32.mxu0 0.0
    %644 = vmatmul.mubr.f32.gmra.mrb[0].mxu0 %v574
    %v645 = vpop.f32.mrb[0].mxu0
    %v646 = vadd.f32 0.0, %v645
    %v647 = vpop.f32.mrb[0].mxu0
    %648 = vmatprep.mubr.f32.mxu0 0.0
    %649 = vmatmul.mubr.f32.gmra.mrb[0].mxu0 %v577
    %v650 = vpop.f32.mrb[0].mxu0
    %v651 = vadd.f32 0.0, %v650
    %v652 = vpop.f32.mrb[0].mxu0
    %653 = vdwg.mxu0
    %656 = vrot.lane.b32.xlu0 %v362, 32
    %v657 = vpop.permute.xlu0 %656
    %658 = vrot.lane.b32.xlu0 %v363, 32
    %v659 = vpop.permute.xlu0 %658
    %v663 = vsel %vm164, %v354, 0
    %v666 = vsel %vm164, %v359, 0
    %668 = vmatprep.subr.mxu0 0.0
    %669 = vmatpush1.msra.mxu0 %v657
    %670 = vmatprep.subr.mxu0 0.0
    %671 = vmatpush1.msra.mxu0 %v659
    %672 = vmatprep.subr.mxu0 0.0
    %673 = vmatpush1.msra.mxu0 0.0
    %674 = vmatprep.subr.mxu0 0.0
    %675 = vmatpush1.msra.mxu0 0.0
    %676 = vmatprep.subr.mxu0 0.0
    %677 = vmatpush1.msra.mxu0 0.0
    %678 = vmatprep.subr.mxu0 0.0
    %679 = vmatpush1.msra.mxu0 0.0
    %680 = vmatprep.subr.mxu0 0.0
    %681 = vmatpush1.msra.mxu0 0.0
    %682 = vmatprep.subr.mxu0 0.0
    %683 = vmatpush1.msra.mxu0 0.0
    %684 = vmatprep.subr.mxu0 0.0
    %685 = vmatpush1.msra.mxu0 0.0
    %686 = vmatprep.subr.mxu0 0.0
    %687 = vmatpush1.msra.mxu0 0.0
    %688 = vmatprep.subr.mxu0 0.0
    %689 = vmatpush1.msra.mxu0 0.0
    %690 = vmatprep.subr.mxu0 0.0
    %691 = vmatpush1.msra.mxu0 0.0
    %692 = vmatprep.subr.mxu0 0.0
    %693 = vmatpush1.msra.mxu0 0.0
    %694 = vmatprep.subr.mxu0 0.0
    %695 = vmatpush1.msra.mxu0 0.0
    %696 = vmatprep.subr.mxu0 0.0
    %697 = vmatpush1.msra.mxu0 0.0
    %698 = vmatprep.subr.mxu0 0.0
    %699 = vmatpush1.msra.mxu0 0.0
    %700 = vmatprep.subr.mxu0 0.0
    %701 = vmatpush1.msra.mxu0 0.0
    %702 = vmatprep.subr.mxu0 0.0
    %703 = vmatpush1.msra.mxu0 0.0
    %704 = vmatprep.subr.mxu0 0.0
    %705 = vmatpush1.msra.mxu0 0.0
    %706 = vmatprep.subr.mxu0 0.0
    %707 = vmatpush1.msra.mxu0 0.0
    %708 = vmatprep.subr.mxu0 0.0
    %709 = vmatpush1.msra.mxu0 0.0
    %710 = vmatprep.subr.mxu0 0.0
    %711 = vmatpush1.msra.mxu0 0.0
    %712 = vmatprep.subr.mxu0 0.0
    %713 = vmatpush1.msra.mxu0 0.0
    %714 = vmatprep.subr.mxu0 0.0
    %715 = vmatpush1.msra.mxu0 0.0
    %716 = vmatprep.subr.mxu0 0.0
    %717 = vmatpush1.msra.mxu0 0.0
    %718 = vmatprep.subr.mxu0 0.0
    %719 = vmatpush1.msra.mxu0 0.0
    %720 = vmatprep.subr.mxu0 0.0
    %721 = vmatpush1.msra.mxu0 0.0
    %722 = vmatprep.subr.mxu0 0.0
    %723 = vmatpush1.msra.mxu0 0.0
    %724 = vmatprep.subr.mxu0 0.0
    %725 = vmatpush1.msra.mxu0 0.0
    %726 = vmatprep.subr.mxu0 0.0
    %727 = vmatpush1.msra.mxu0 0.0
    %728 = vmatprep.subr.mxu0 0.0
    %729 = vmatpush1.msra.mxu0 0.0
    %730 = vmatprep.subr.mxu0 0.0
    %731 = vmatpush1.msra.mxu0 0.0
    %732 = vmatprep.mubr.f32.mxu0 0.0
    %733 = vmatmul.mubr.f32.gmra.mrb[0].mxu0 %v663
    %v734 = vpop.f32.mrb[0].mxu0
    %v735 = vadd.f32 %v646, %v734
    %v736 = vpop.f32.mrb[0].mxu0
    %737 = vmatprep.mubr.f32.mxu0 0.0
    %738 = vmatmul.mubr.f32.gmra.mrb[0].mxu0 %v666
    %v739 = vpop.f32.mrb[0].mxu0
    %v740 = vadd.f32 %v651, %v739
    %v741 = vpop.f32.mrb[0].mxu0
    %742 = vdwg.mxu0
    %v743 = vadd.f32 %v735, %v68
    %v744 = vadd.f32 %v740, %v68
    %v745 = vadd.f32 %v46, %v743
    %v746 = vadd.f32 %v43, %v744
    %v747 = vsel %vm75, %v745, 0.0
    %748 = vadd.xlane.f32.xlu0 %v747
    %v749 = vpop.xlane.xlu0 %748
    %vm750 = vcmask 257024
    %v751 = vsel %vm750, %v746, 0.0
    %752 = vadd.xlane.f32.xlu0 %v751
    %v753 = vpop.xlane.xlu0 %752
    %v754 = vrcp.pop 32.0
    %v755 = vmul.f32 %v749, %v754
    %v756 = vmul.f32 %v753, %v754
    %v757 = vsub.f32 %v745, %v755
    %v758 = vsub.f32 %v746, %v756
    %v759 = vmul.f32 %v757, %v757
    %v760 = vmul.f32 %v758, %v758
    %v761 = vsel %vm75, %v759, 0.0
    %762 = vadd.xlane.f32.xlu0 %v761
    %v763 = vpop.xlane.xlu0 %762
    %v764 = vsel %vm750, %v760, 0.0
    %765 = vadd.xlane.f32.xlu0 %v764
    %v766 = vpop.xlane.xlu0 %765
    %v767 = vmul.f32 %v763, %v754
    %v768 = vmul.f32 %v766, %v754
    %v769 = vadd.f32 %v767, 1e-05
    %v770 = vadd.f32 %v768, 1e-05
    %v771 = vrsqrt.pop %v769
    %v772 = vrsqrt.pop %v770
    %v773 = vmul.f32 %v757, %v771
    %v774 = vmul.f32 %v758, %v772
    %v775 = vmul.f32 %v773, %v71
    %v776 = vmul.f32 %v774, %v71
    %v777 = vadd.f32 %v775, %v72
    %v778 = vadd.f32 %v776, %v72
    %v780 = vsel %vm75, %v777, 0
    %v783 = vsel %vm75, %v778, 0
    %785 = vmatprep.subr.mxu0 0.0
    %786 = vmatpush1.msra.mxu0 %v63
    %787 = vmatprep.subr.mxu0 0.0
    %788 = vmatpush1.msra.mxu0 %v64
    %789 = vmatprep.subr.mxu0 0.0
    %790 = vmatpush1.msra.mxu0 %v65
    %791 = vmatprep.subr.mxu0 0.0
    %792 = vmatpush1.msra.mxu0 %v66
    %793 = vmatprep.subr.mxu0 0.0
    %794 = vmatpush1.msra.mxu0 0.0
    %795 = vmatprep.subr.mxu0 0.0
    %796 = vmatpush1.msra.mxu0 0.0
    %797 = vmatprep.subr.mxu0 0.0
    %798 = vmatpush1.msra.mxu0 0.0
    %799 = vmatprep.subr.mxu0 0.0
    %800 = vmatpush1.msra.mxu0 0.0
    %801 = vmatprep.subr.mxu0 0.0
    %802 = vmatpush1.msra.mxu0 0.0
    %803 = vmatprep.subr.mxu0 0.0
    %804 = vmatpush1.msra.mxu0 0.0
    %805 = vmatprep.subr.mxu0 0.0
    %806 = vmatpush1.msra.mxu0 0.0
    %807 = vmatprep.subr.mxu0 0.0
    %808 = vmatpush1.msra.mxu0 0.0
    %809 = vmatprep.subr.mxu0 0.0
    %810 = vmatpush1.msra.mxu0 0.0
    %811 = vmatprep.subr.mxu0 0.0
    %812 = vmatpush1.msra.mxu0 0.0
    %813 = vmatprep.subr.mxu0 0.0
    %814 = vmatpush1.msra.mxu0 0.0
    %815 = vmatprep.subr.mxu0 0.0
    %816 = vmatpush1.msra.mxu0 0.0
    %817 = vmatprep.subr.mxu0 0.0
    %818 = vmatpush1.msra.mxu0 0.0
    %819 = vmatprep.subr.mxu0 0.0
    %820 = vmatpush1.msra.mxu0 0.0
    %821 = vmatprep.subr.mxu0 0.0
    %822 = vmatpush1.msra.mxu0 0.0
    %823 = vmatprep.subr.mxu0 0.0
    %824 = vmatpush1.msra.mxu0 0.0
    %825 = vmatprep.subr.mxu0 0.0
    %826 = vmatpush1.msra.mxu0 0.0
    %827 = vmatprep.subr.mxu0 0.0
    %828 = vmatpush1.msra.mxu0 0.0
    %829 = vmatprep.subr.mxu0 0.0
    %830 = vmatpush1.msra.mxu0 0.0
    %831 = vmatprep.subr.mxu0 0.0
    %832 = vmatpush1.msra.mxu0 0.0
    %833 = vmatprep.subr.mxu0 0.0
    %834 = vmatpush1.msra.mxu0 0.0
    %835 = vmatprep.subr.mxu0 0.0
    %836 = vmatpush1.msra.mxu0 0.0
    %837 = vmatprep.subr.mxu0 0.0
    %838 = vmatpush1.msra.mxu0 0.0
    %839 = vmatprep.subr.mxu0 0.0
    %840 = vmatpush1.msra.mxu0 0.0
    %841 = vmatprep.subr.mxu0 0.0
    %842 = vmatpush1.msra.mxu0 0.0
    %843 = vmatprep.subr.mxu0 0.0
    %844 = vmatpush1.msra.mxu0 0.0
    %845 = vmatprep.subr.mxu0 0.0
    %846 = vmatpush1.msra.mxu0 0.0
    %847 = vmatprep.subr.mxu0 0.0
    %848 = vmatpush1.msra.mxu0 0.0
    %849 = vmatprep.mubr.f32.mxu0 0.0
    %850 = vmatmul.mubr.f32.gmra.mrb[0].mxu0 %v780
    %v851 = vpop.f32.mrb[0].mxu0
    %v852 = vadd.f32 %v69, %v851
    %v853 = vpop.f32.mrb[0].mxu0
    %854 = vmatprep.mubr.f32.mxu0 0.0
    %855 = vmatmul.mubr.f32.gmra.mrb[0].mxu0 %v783
    %v856 = vpop.f32.mrb[0].mxu0
    %v857 = vadd.f32 %v69, %v856
    %v858 = vpop.f32.mrb[0].mxu0
    %859 = vdwg.mxu0
    %v860 = vmax.f32 %v852, 0.0
    %v861 = vmax.f32 %v857, 0.0
    %864 = vrot.lane.b32.xlu0 %v860, 96
    %v865 = vpop.permute.xlu0 %864
    %866 = vrot.lane.b32.xlu0 %v861, 96
    %v867 = vpop.permute.xlu0 %866
    %872 = vrot.lane.b32.xlu0 %v63, 32
    %v873 = vpop.permute.xlu0 %872
    %874 = vrot.lane.b32.xlu0 %v64, 32
    %v875 = vpop.permute.xlu0 %874
    %876 = vrot.lane.b32.xlu0 %v65, 32
    %v877 = vpop.permute.xlu0 %876
    %878 = vrot.lane.b32.xlu0 %v66, 32
    %v879 = vpop.permute.xlu0 %878
    %v884 = vsel %vm75, %v865, 0
    %v886 = vsel %vm75, %v867, 0
    %888 = vmatprep.subr.mxu0 0.0
    %889 = vmatpush1.msra.mxu0 %v873
    %890 = vmatprep.subr.mxu0 0.0
    %891 = vmatpush1.msra.mxu0 %v875
    %892 = vmatprep.subr.mxu0 0.0
    %893 = vmatpush1.msra.mxu0 %v877
    %894 = vmatprep.subr.mxu0 0.0
    %895 = vmatpush1.msra.mxu0 %v879
    %896 = vmatprep.subr.mxu0 0.0
    %897 = vmatpush1.msra.mxu0 0.0
    %898 = vmatprep.subr.mxu0 0.0
    %899 = vmatpush1.msra.mxu0 0.0
    %900 = vmatprep.subr.mxu0 0.0
    %901 = vmatpush1.msra.mxu0 0.0
    %902 = vmatprep.subr.mxu0 0.0
    %903 = vmatpush1.msra.mxu0 0.0
    %904 = vmatprep.subr.mxu0 0.0
    %905 = vmatpush1.msra.mxu0 0.0
    %906 = vmatprep.subr.mxu0 0.0
    %907 = vmatpush1.msra.mxu0 0.0
    %908 = vmatprep.subr.mxu0 0.0
    %909 = vmatpush1.msra.mxu0 0.0
    %910 = vmatprep.subr.mxu0 0.0
    %911 = vmatpush1.msra.mxu0 0.0
    %912 = vmatprep.subr.mxu0 0.0
    %913 = vmatpush1.msra.mxu0 0.0
    %914 = vmatprep.subr.mxu0 0.0
    %915 = vmatpush1.msra.mxu0 0.0
    %916 = vmatprep.subr.mxu0 0.0
    %917 = vmatpush1.msra.mxu0 0.0
    %918 = vmatprep.subr.mxu0 0.0
    %919 = vmatpush1.msra.mxu0 0.0
    %920 = vmatprep.subr.mxu0 0.0
    %921 = vmatpush1.msra.mxu0 0.0
    %922 = vmatprep.subr.mxu0 0.0
    %923 = vmatpush1.msra.mxu0 0.0
    %924 = vmatprep.subr.mxu0 0.0
    %925 = vmatpush1.msra.mxu0 0.0
    %926 = vmatprep.subr.mxu0 0.0
    %927 = vmatpush1.msra.mxu0 0.0
    %928 = vmatprep.subr.mxu0 0.0
    %929 = vmatpush1.msra.mxu0 0.0
    %930 = vmatprep.subr.mxu0 0.0
    %931 = vmatpush1.msra.mxu0 0.0
    %932 = vmatprep.subr.mxu0 0.0
    %933 = vmatpush1.msra.mxu0 0.0
    %934 = vmatprep.subr.mxu0 0.0
    %935 = vmatpush1.msra.mxu0 0.0
    %936 = vmatprep.subr.mxu0 0.0
    %937 = vmatpush1.msra.mxu0 0.0
    %938 = vmatprep.subr.mxu0 0.0
    %939 = vmatpush1.msra.mxu0 0.0
    %940 = vmatprep.subr.mxu0 0.0
    %941 = vmatpush1.msra.mxu0 0.0
    %942 = vmatprep.subr.mxu0 0.0
    %943 = vmatpush1.msra.mxu0 0.0
    %944 = vmatprep.subr.mxu0 0.0
    %945 = vmatpush1.msra.mxu0 0.0
    %946 = vmatprep.subr.mxu0 0.0
    %947 = vmatpush1.msra.mxu0 0.0
    %948 = vmatprep.subr.mxu0 0.0
    %949 = vmatpush1.msra.mxu0 0.0
    %950 = vmatprep.subr.mxu0 0.0
    %951 = vmatpush1.msra.mxu0 0.0
    %952 = vmatprep.mubr.f32.mxu0 0.0
    %953 = vmatmul.mubr.f32.gmra.mrb[0].mxu0 %v884
    %v954 = vpop.f32.mrb[0].mxu0
    %v955 = vadd.f32 0.0, %v954
    %v956 = vpop.f32.mrb[0].mxu0
    %957 = vmatprep.mubr.f32.mxu0 0.0
    %958 = vmatmul.mubr.f32.gmra.mrb[0].mxu0 %v886
    %v959 = vpop.f32.mrb[0].mxu0
    %v960 = vadd.f32 0.0, %v959
    %v961 = vpop.f32.mrb[0].mxu0
    %962 = vdwg.mxu0
    %963 = vrot.lane.b32.xlu0 %v63, 64
    %v964 = vpop.permute.xlu0 %963
    %965 = vrot.lane.b32.xlu0 %v64, 64
    %v966 = vpop.permute.xlu0 %965
    %967 = vrot.lane.b32.xlu0 %v65, 64
    %v968 = vpop.permute.xlu0 %967
    %969 = vrot.lane.b32.xlu0 %v66, 64
    %v970 = vpop.permute.xlu0 %969
    %v975 = vsel %vm75, %v860, 0
    %v977 = vsel %vm75, %v861, 0
    %979 = vmatprep.subr.mxu0 0.0
    %980 = vmatpush1.msra.mxu0 %v964
    %981 = vmatprep.subr.mxu0 0.0
    %982 = vmatpush1.msra.mxu0 %v966
    %983 = vmatprep.subr.mxu0 0.0
    %984 = vmatpush1.msra.mxu0 %v968
    %985 = vmatprep.subr.mxu0 0.0
    %986 = vmatpush1.msra.mxu0 %v970
    %987 = vmatprep.subr.mxu0 0.0
    %988 = vmatpush1.msra.mxu0 0.0
    %989 = vmatprep.subr.mxu0 0.0
    %990 = vmatpush1.msra.mxu0 0.0
    %991 = vmatprep.subr.mxu0 0.0
    %992 = vmatpush1.msra.mxu0 0.0
    %993 = vmatprep.subr.mxu0 0.0
    %994 = vmatpush1.msra.mxu0 0.0
    %995 = vmatprep.subr.mxu0 0.0
    %996 = vmatpush1.msra.mxu0 0.0
    %997 = vmatprep.subr.mxu0 0.0
    %998 = vmatpush1.msra.mxu0 0.0
    %999 = vmatprep.subr.mxu0 0.0
    %1000 = vmatpush1.msra.mxu0 0.0
    %1001 = vmatprep.subr.mxu0 0.0
    %1002 = vmatpush1.msra.mxu0 0.0
    %1003 = vmatprep.subr.mxu0 0.0
    %1004 = vmatpush1.msra.mxu0 0.0
    %1005 = vmatprep.subr.mxu0 0.0
    %1006 = vmatpush1.msra.mxu0 0.0
    %1007 = vmatprep.subr.mxu0 0.0
    %1008 = vmatpush1.msra.mxu0 0.0
    %1009 = vmatprep.subr.mxu0 0.0
    %1010 = vmatpush1.msra.mxu0 0.0
    %1011 = vmatprep.subr.mxu0 0.0
    %1012 = vmatpush1.msra.mxu0 0.0
    %1013 = vmatprep.subr.mxu0 0.0
    %1014 = vmatpush1.msra.mxu0 0.0
    %1015 = vmatprep.subr.mxu0 0.0
    %1016 = vmatpush1.msra.mxu0 0.0
    %1017 = vmatprep.subr.mxu0 0.0
    %1018 = vmatpush1.msra.mxu0 0.0
    %1019 = vmatprep.subr.mxu0 0.0
    %1020 = vmatpush1.msra.mxu0 0.0
    %1021 = vmatprep.subr.mxu0 0.0
    %1022 = vmatpush1.msra.mxu0 0.0
    %1023 = vmatprep.subr.mxu0 0.0
    %1024 = vmatpush1.msra.mxu0 0.0
    %1025 = vmatprep.subr.mxu0 0.0
    %1026 = vmatpush1.msra.mxu0 0.0
    %1027 = vmatprep.subr.mxu0 0.0
    %1028 = vmatpush1.msra.mxu0 0.0
    %1029 = vmatprep.subr.mxu0 0.0
    %1030 = vmatpush1.msra.mxu0 0.0
    %1031 = vmatprep.subr.mxu0 0.0
    %1032 = vmatpush1.msra.mxu0 0.0
    %1033 = vmatprep.subr.mxu0 0.0
    %1034 = vmatpush1.msra.mxu0 0.0
    %1035 = vmatprep.subr.mxu0 0.0
    %1036 = vmatpush1.msra.mxu0 0.0
    %1037 = vmatprep.subr.mxu0 0.0
    %1038 = vmatpush1.msra.mxu0 0.0
    %1039 = vmatprep.subr.mxu0 0.0
    %1040 = vmatpush1.msra.mxu0 0.0
    %1041 = vmatprep.subr.mxu0 0.0
    %1042 = vmatpush1.msra.mxu0 0.0
    %1043 = vmatprep.mubr.f32.mxu0 0.0
    %1044 = vmatmul.mubr.f32.gmra.mrb[0].mxu0 %v975
    %v1045 = vpop.f32.mrb[0].mxu0
    %v1046 = vadd.f32 %v955, %v1045
    %v1047 = vpop.f32.mrb[0].mxu0
    %1048 = vmatprep.mubr.f32.mxu0 0.0
    %1049 = vmatmul.mubr.f32.gmra.mrb[0].mxu0 %v977
    %v1050 = vpop.f32.mrb[0].mxu0
    %v1051 = vadd.f32 %v960, %v1050
    %v1052 = vpop.f32.mrb[0].mxu0
    %1053 = vdwg.mxu0
    %v1054 = vadd.f32 %v1046, %v70
    %v1055 = vadd.f32 %v1051, %v70
    %v1056 = vadd.f32 %v777, %v1054
    %v1057 = vadd.f32 %v778, %v1055
    %v1058 = vsel %vm75, %v1056, 0.0
    %1059 = vadd.xlane.f32.xlu0 %v1058
    %v1060 = vpop.xlane.xlu0 %1059
    %v1061 = vsel %vm750, %v1057, 0.0
    %1062 = vadd.xlane.f32.xlu0 %v1061
    %v1063 = vpop.xlane.xlu0 %1062
    %v1064 = vmul.f32 %v1060, %v754
    %v1065 = vmul.f32 %v1063, %v754
    %v1066 = vsub.f32 %v1056, %v1064
    %v1067 = vsub.f32 %v1057, %v1065
    %v1068 = vmul.f32 %v1066, %v1066
    %v1069 = vmul.f32 %v1067, %v1067
    %v1070 = vsel %vm75, %v1068, 0.0
    %1071 = vadd.xlane.f32.xlu0 %v1070
    %v1072 = vpop.xlane.xlu0 %1071
    %v1073 = vsel %vm750, %v1069, 0.0
    %1074 = vadd.xlane.f32.xlu0 %v1073
    %v1075 = vpop.xlane.xlu0 %1074
    %v1076 = vmul.f32 %v1072, %v754
    %v1077 = vmul.f32 %v1075, %v754
    %v1078 = vadd.f32 %v1076, 1e-05
    %v1079 = vadd.f32 %v1077, 1e-05
    %v1080 = vrsqrt.pop %v1078
    %v1081 = vrsqrt.pop %v1079
    %v1082 = vmul.f32 %v1066, %v1080
    %v1083 = vmul.f32 %v1067, %v1081
    %v1084 = vmul.f32 %v1082, %v73
    %v1085 = vmul.f32 %v1083, %v73
    %v1086 = vadd.f32 %v1084, %v74
    %v1087 = vadd.f32 %v1085, %v74
    %s1088 = scalar_lea.vmem [#allocation4], 80
    %v1089 = vld [vmem:[%s1088] sm:$0xff]
    %v1090 = vld [vmem:[%s1088 + $0x10] sm:$0xff]
    %v1091 = vld [vmem:[%s1088 + $0x20] sm:$0xff]
    %v1092 = vld [vmem:[%s1088 + $0x30] sm:$0xff]
    %v1093 = vld [vmem:[%s1088 + $0x8] sm:$0xff]
    %v1094 = vld [vmem:[%s1088 + $0x18] sm:$0xff]
    %v1095 = vld [vmem:[%s1088 + $0x28] sm:$0xff]
    %v1096 = vld [vmem:[%s1088 + $0x38] sm:$0xff]
    %v1097 = vld [vmem:[%s1088 + $0x40] ss:$0 sm:$0xff]
    %v1098 = vld [vmem:[%s1088 + $0x41] ss:$0 sm:$0xff]
    %v1099 = vld [vmem:[%s1088 + $0x42] ss:$0 sm:$0xff]
    %v1100 = vld [vmem:[%s1088 + $0x43] ss:$0 sm:$0xff]
    %v1101 = vld [vmem:[%s1088 + $0x44] ss:$0 sm:$0xff]
    %v1102 = vld [vmem:[%s1088 + $0x45] ss:$0 sm:$0xff]
    %v1103 = vld [vmem:[%s1088 + $0x46] ss:$0 sm:$0xff]
    %v1104 = vld [vmem:[%s1088 + $0x47] ss:$0 sm:$0xff]
    %v1106 = vsel %vm75, %v1086, 0
    %v1109 = vsel %vm75, %v1087, 0
    %1111 = vmatprep.subr.mxu0 0.0
    %1112 = vmatpush1.msra.mxu0 %v1089
    %1113 = vmatprep.subr.mxu0 0.0
    %1114 = vmatpush1.msra.mxu0 %v1090
    %1115 = vmatprep.subr.mxu0 0.0
    %1116 = vmatpush1.msra.mxu0 %v1091
    %1117 = vmatprep.subr.mxu0 0.0
    %1118 = vmatpush1.msra.mxu0 %v1092
    %1119 = vmatprep.subr.mxu0 0.0
    %1120 = vmatpush1.msra.mxu0 0.0
    %1121 = vmatprep.subr.mxu0 0.0
    %1122 = vmatpush1.msra.mxu0 0.0
    %1123 = vmatprep.subr.mxu0 0.0
    %1124 = vmatpush1.msra.mxu0 0.0
    %1125 = vmatprep.subr.mxu0 0.0
    %1126 = vmatpush1.msra.mxu0 0.0
    %1127 = vmatprep.subr.mxu0 0.0
    %1128 = vmatpush1.msra.mxu0 0.0
    %1129 = vmatprep.subr.mxu0 0.0
    %1130 = vmatpush1.msra.mxu0 0.0
    %1131 = vmatprep.subr.mxu0 0.0
    %1132 = vmatpush1.msra.mxu0 0.0
    %1133 = vmatprep.subr.mxu0 0.0
    %1134 = vmatpush1.msra.mxu0 0.0
    %1135 = vmatprep.subr.mxu0 0.0
    %1136 = vmatpush1.msra.mxu0 0.0
    %1137 = vmatprep.subr.mxu0 0.0
    %1138 = vmatpush1.msra.mxu0 0.0
    %1139 = vmatprep.subr.mxu0 0.0
    %1140 = vmatpush1.msra.mxu0 0.0
    %1141 = vmatprep.subr.mxu0 0.0
    %1142 = vmatpush1.msra.mxu0 0.0
    %1143 = vmatprep.subr.mxu0 0.0
    %1144 = vmatpush1.msra.mxu0 0.0
    %1145 = vmatprep.subr.mxu0 0.0
    %1146 = vmatpush1.msra.mxu0 0.0
    %1147 = vmatprep.subr.mxu0 0.0
    %1148 = vmatpush1.msra.mxu0 0.0
    %1149 = vmatprep.subr.mxu0 0.0
    %1150 = vmatpush1.msra.mxu0 0.0
    %1151 = vmatprep.subr.mxu0 0.0
    %1152 = vmatpush1.msra.mxu0 0.0
    %1153 = vmatprep.subr.mxu0 0.0
    %1154 = vmatpush1.msra.mxu0 0.0
    %1155 = vmatprep.subr.mxu0 0.0
    %1156 = vmatpush1.msra.mxu0 0.0
    %1157 = vmatprep.subr.mxu0 0.0
    %1158 = vmatpush1.msra.mxu0 0.0
    %1159 = vmatprep.subr.mxu0 0.0
    %1160 = vmatpush1.msra.mxu0 0.0
    %1161 = vmatprep.subr.mxu0 0.0
    %1162 = vmatpush1.msra.mxu0 0.0
    %1163 = vmatprep.subr.mxu0 0.0
    %1164 = vmatpush1.msra.mxu0 0.0
    %1165 = vmatprep.subr.mxu0 0.0
    %1166 = vmatpush1.msra.mxu0 0.0
    %1167 = vmatprep.subr.mxu0 0.0
    %1168 = vmatpush1.msra.mxu0 0.0
    %1169 = vmatprep.subr.mxu0 0.0
    %1170 = vmatpush1.msra.mxu0 0.0
    %1171 = vmatprep.subr.mxu0 0.0
    %1172 = vmatpush1.msra.mxu0 0.0
    %1173 = vmatprep.subr.mxu0 0.0
    %1174 = vmatpush1.msra.mxu0 0.0
    %1175 = vmatprep.mubr.f32.mxu0 0.0
    %1176 = vmatmul.mubr.f32.gmra.mrb[0].mxu0 %v1106
    %v1177 = vpop.f32.mrb[0].mxu0
    %v1178 = vadd.f32 %v1097, %v1177
    %v1179 = vpop.f32.mrb[0].mxu0
    %1180 = vmatprep.mubr.f32.mxu0 0.0
    %1181 = vmatmul.mubr.f32.gmra.mrb[0].mxu0 %v1109
    %v1182 = vpop.f32.mrb[0].mxu0
    %v1183 = vadd.f32 %v1097, %v1182
    %v1184 = vpop.f32.mrb[0].mxu0
    %1185 = vdwg.mxu0
    %v1186 = vmul.f32 %v1178, 0.25
    %v1187 = vmul.f32 %v1183, 0.25
    %1190 = vrot.lane.b32.xlu0 %v1178, 96
    %v1191 = vpop.permute.xlu0 %1190
    %1192 = vrot.lane.b32.xlu0 %v1183, 96
    %v1193 = vpop.permute.xlu0 %1192
    %v1195 = vsel %vm164, %v1186, 0
    %v1198 = vsel %vm164, %v1187, 0
    %v1200 = vsel %vm164, %v1191, 0
    %v1202 = vsel %vm164, %v1193, 0
    %1204 = vmatprep.subr.mxu0 0.0
    %1205 = vmatpush1.xpose.msra.mxu0 %v1200
    %1206 = vmatprep.subr.mxu0 0.0
    %1207 = vmatpush1.xpose.msra.mxu0 %v1202
    %1208 = vmatprep.subr.mxu0 0.0
    %1209 = vmatpush1.xpose.msra.mxu0 0.0
    %1210 = vmatprep.subr.mxu0 0.0
    %1211 = vmatpush1.xpose.msra.mxu0 0.0
    %1212 = vmatprep.subr.mxu0 0.0
    %1213 = vmatpush1.xpose.msra.mxu0 0.0
    %1214 = vmatprep.subr.mxu0 0.0
    %1215 = vmatpush1.xpose.msra.mxu0 0.0
    %1216 = vmatprep.subr.mxu0 0.0
    %1217 = vmatpush1.xpose.msra.mxu0 0.0
    %1218 = vmatprep.subr.mxu0 0.0
    %1219 = vmatpush1.xpose.msra.mxu0 0.0
    %1220 = vmatprep.subr.mxu0 0.0
    %1221 = vmatpush1.xpose.msra.mxu0 0.0
    %1222 = vmatprep.subr.mxu0 0.0
    %1223 = vmatpush1.xpose.msra.mxu0 0.0
    %1224 = vmatprep.subr.mxu0 0.0
    %1225 = vmatpush1.xpose.msra.mxu0 0.0
    %1226 = vmatprep.subr.mxu0 0.0
    %1227 = vmatpush1.xpose.msra.mxu0 0.0
    %1228 = vmatprep.subr.mxu0 0.0
    %1229 = vmatpush1.xpose.msra.mxu0 0.0
    %1230 = vmatprep.subr.mxu0 0.0
    %1231 = vmatpush1.xpose.msra.mxu0 0.0
    %1232 = vmatprep.subr.mxu0 0.0
    %1233 = vmatpush1.xpose.msra.mxu0 0.0
    %1234 = vmatprep.subr.mxu0 0.0
    %1235 = vmatpush1.xpose.msra.mxu0 0.0
    %1236 = vmatprep.subr.mxu0 0.0
    %1237 = vmatpush1.xpose.msra.mxu0 0.0
    %1238 = vmatprep.subr.mxu0 0.0
    %1239 = vmatpush1.xpose.msra.mxu0 0.0
    %1240 = vmatprep.subr.mxu0 0.0
    %1241 = vmatpush1.xpose.msra.mxu0 0.0
    %1242 = vmatprep.subr.mxu0 0.0
    %1243 = vmatpush1.xpose.msra.mxu0 0.0
    %1244 = vmatprep.subr.mxu0 0.0
    %1245 = vmatpush1.xpose.msra.mxu0 0.0
    %1246 = vmatprep.subr.mxu0 0.0
    %1247 = vmatpush1.xpose.msra.mxu0 0.0
    %1248 = vmatprep.subr.mxu0 0.0
    %1249 = vmatpush1.xpose.msra.mxu0 0.0
    %1250 = vmatprep.subr.mxu0 0.0
    %1251 = vmatpush1.xpose.msra.mxu0 0.0
    %1252 = vmatprep.subr.mxu0 0.0
    %1253 = vmatpush1.xpose.msra.mxu0 0.0
    %1254 = vmatprep.subr.mxu0 0.0
    %1255 = vmatpush1.xpose.msra.mxu0 0.0
    %1256 = vmatprep.subr.mxu0 0.0
    %1257 = vmatpush1.xpose.msra.mxu0 0.0
    %1258 = vmatprep.subr.mxu0 0.0
    %1259 = vmatpush1.xpose.msra.mxu0 0.0
    %1260 = vmatprep.subr.mxu0 0.0
    %1261 = vmatpush1.xpose.msra.mxu0 0.0
    %1262 = vmatprep.subr.mxu0 0.0
    %1263 = vmatpush1.xpose.msra.mxu0 0.0
    %1264 = vmatprep.subr.mxu0 0.0
    %1265 = vmatpush1.xpose.msra.mxu0 0.0
    %1266 = vmatprep.subr.mxu0 0.0
    %1267 = vmatpush1.xpose.msra.mxu0 0.0
    %1268 = vmatprep.mubr.f32.mxu0 0.0
    %1269 = vmatmul.mubr.f32.gmra.mrb[0].mxu0 %v1195
    %v1270 = vpop.f32.mrb[0].mxu0
    %v1271 = vadd.f32 %v57, %v1270
    %v1272 = vpop.f32.mrb[0].mxu0
    %1273 = vmatprep.mubr.f32.mxu0 0.0
    %1274 = vmatmul.mubr.f32.gmra.mrb[0].mxu0 %v1198
    %v1275 = vpop.f32.mrb[0].mxu0
    %v1276 = vadd.f32 %v58, %v1275
    %v1277 = vpop.f32.mrb[0].mxu0
    %1278 = vdwg.mxu0
    %v1279 = vsel %vm250, %v1271, -inf
    %1280 = vmax.xlane.f32.xlu0 %v1279
    %v1281 = vpop.xlane.xlu0 %1280
    %v1282 = vsel %vm254, %v1276, -inf
    %1283 = vmax.xlane.f32.xlu0 %v1282
    %v1284 = vpop.xlane.xlu0 %1283
    %v1285 = vsub.f32 %v1271, %v1281
    %v1286 = vsub.f32 %v1276, %v1284
    %v1287 = vmul.f32 %v1285, 1.442695
    %v1288 = vpow.pop %v1287
    %v1289 = vmul.f32 %v1286, 1.442695
    %v1290 = vpow.pop %v1289
    %v1291 = vsel %vm250, %v1288, 0.0
    %1292 = vadd.xlane.f32.xlu0 %v1291
    %v1293 = vpop.xlane.xlu0 %1292
    %v1294 = vsel %vm254, %v1290, 0.0
    %1295 = vadd.xlane.f32.xlu0 %v1294
    %v1296 = vpop.xlane.xlu0 %1295
    %v1297 = vrcp.pop %v1293
    %v1298 = vmul.f32 %v1288, %v1297
    %v1299 = vrcp.pop %v1296
    %v1300 = vmul.f32 %v1290, %v1299
    %1301 = vrot.lane.b32.xlu0 %v1178, 64
    %v1302 = vpop.permute.xlu0 %1301
    %1303 = vrot.lane.b32.xlu0 %v1183, 64
    %v1304 = vpop.permute.xlu0 %1303
    %v1307 = vsel %vm250, %v1298, 0
    %v1310 = vsel %vm250, %v1300, 0
    %v1312 = vsel %vm45, %v1304, 0
    %1314 = vmatprep.subr.mxu0 0.0
    %1315 = vmatpush1.msra.mxu0 %v1302
    %1316 = vmatprep.subr.mxu0 0.0
    %1317 = vmatpush1.msra.mxu0 %v1312
    %1318 = vmatprep.subr.mxu0 0.0
    %1319 = vmatpush1.msra.mxu0 0.0
    %1320 = vmatprep.subr.mxu0 0.0
    %1321 = vmatpush1.msra.mxu0 0.0
    %1322 = vmatprep.subr.mxu0 0.0
    %1323 = vmatpush1.msra.mxu0 0.0
    %1324 = vmatprep.subr.mxu0 0.0
    %1325 = vmatpush1.msra.mxu0 0.0
    %1326 = vmatprep.subr.mxu0 0.0
    %1327 = vmatpush1.msra.mxu0 0.0
    %1328 = vmatprep.subr.mxu0 0.0
    %1329 = vmatpush1.msra.mxu0 0.0
    %1330 = vmatprep.subr.mxu0 0.0
    %1331 = vmatpush1.msra.mxu0 0.0
    %1332 = vmatprep.subr.mxu0 0.0
    %1333 = vmatpush1.msra.mxu0 0.0
    %1334 = vmatprep.subr.mxu0 0.0
    %1335 = vmatpush1.msra.mxu0 0.0
    %1336 = vmatprep.subr.mxu0 0.0
    %1337 = vmatpush1.msra.mxu0 0.0
    %1338 = vmatprep.subr.mxu0 0.0
    %1339 = vmatpush1.msra.mxu0 0.0
    %1340 = vmatprep.subr.mxu0 0.0
    %1341 = vmatpush1.msra.mxu0 0.0
    %1342 = vmatprep.subr.mxu0 0.0
    %1343 = vmatpush1.msra.mxu0 0.0
    %1344 = vmatprep.subr.mxu0 0.0
    %1345 = vmatpush1.msra.mxu0 0.0
    %1346 = vmatprep.subr.mxu0 0.0
    %1347 = vmatpush1.msra.mxu0 0.0
    %1348 = vmatprep.subr.mxu0 0.0
    %1349 = vmatpush1.msra.mxu0 0.0
    %1350 = vmatprep.subr.mxu0 0.0
    %1351 = vmatpush1.msra.mxu0 0.0
    %1352 = vmatprep.subr.mxu0 0.0
    %1353 = vmatpush1.msra.mxu0 0.0
    %1354 = vmatprep.subr.mxu0 0.0
    %1355 = vmatpush1.msra.mxu0 0.0
    %1356 = vmatprep.subr.mxu0 0.0
    %1357 = vmatpush1.msra.mxu0 0.0
    %1358 = vmatprep.subr.mxu0 0.0
    %1359 = vmatpush1.msra.mxu0 0.0
    %1360 = vmatprep.subr.mxu0 0.0
    %1361 = vmatpush1.msra.mxu0 0.0
    %1362 = vmatprep.subr.mxu0 0.0
    %1363 = vmatpush1.msra.mxu0 0.0
    %1364 = vmatprep.subr.mxu0 0.0
    %1365 = vmatpush1.msra.mxu0 0.0
    %1366 = vmatprep.subr.mxu0 0.0
    %1367 = vmatpush1.msra.mxu0 0.0
    %1368 = vmatprep.subr.mxu0 0.0
    %1369 = vmatpush1.msra.mxu0 0.0
    %1370 = vmatprep.subr.mxu0 0.0
    %1371 = vmatpush1.msra.mxu0 0.0
    %1372 = vmatprep.subr.mxu0 0.0
    %1373 = vmatpush1.msra.mxu0 0.0
    %1374 = vmatprep.subr.mxu0 0.0
    %1375 = vmatpush1.msra.mxu0 0.0
    %1376 = vmatprep.subr.mxu0 0.0
    %1377 = vmatpush1.msra.mxu0 0.0
    %1378 = vmatprep.mubr.f32.mxu0 0.0
    %1379 = vmatmul.mubr.f32.gmra.mrb[0].mxu0 %v1307
    %v1380 = vpop.f32.mrb[0].mxu0
    %v1381 = vadd.f32 0.0, %v1380
    %v1382 = vpop.f32.mrb[0].mxu0
    %1383 = vmatprep.mubr.f32.mxu0 0.0
    %1384 = vmatmul.mubr.f32.gmra.mrb[0].mxu0 %v1310
    %v1385 = vpop.f32.mrb[0].mxu0
    %v1386 = vadd.f32 0.0, %v1385
    %v1387 = vpop.f32.mrb[0].mxu0
    %1388 = vdwg.mxu0
    %v1389 = vld [vmem:[%s1088] sm:$0xff]
    %v1390 = vld [vmem:[%s1088 + $0x10] sm:$0xff]
    %1391 = vrot.lane.b32.xlu0 %v1186, 112
    %v1392 = vpop.permute.xlu0 %1391
    %1393 = vrot.lane.b32.xlu0 %v1187, 112
    %v1394 = vpop.permute.xlu0 %1393
    %1395 = vrot.lane.b32.xlu0 %v1178, 80
    %v1396 = vpop.permute.xlu0 %1395
    %1397 = vrot.lane.b32.xlu0 %v1183, 80
    %v1398 = vpop.permute.xlu0 %1397
    %v1399 = vsel %vm164, %v1392, 0
    %v1401 = vsel %vm164, %v1394, 0
    %v1403 = vsel %vm164, %v1396, 0
    %v1405 = vsel %vm164, %v1398, 0
    %1407 = vmatprep.subr.mxu0 0.0
    %1408 = vmatpush1.xpose.msra.mxu0 %v1403
    %1409 = vmatprep.subr.mxu0 0.0
    %1410 = vmatpush1.xpose.msra.mxu0 %v1405
    %1411 = vmatprep.subr.mxu0 0.0
    %1412 = vmatpush1.xpose.msra.mxu0 0.0
    %1413 = vmatprep.subr.mxu0 0.0
    %1414 = vmatpush1.xpose.msra.mxu0 0.0
    %1415 = vmatprep.subr.mxu0 0.0
    %1416 = vmatpush1.xpose.msra.mxu0 0.0
    %1417 = vmatprep.subr.mxu0 0.0
    %1418 = vmatpush1.xpose.msra.mxu0 0.0
    %1419 = vmatprep.subr.mxu0 0.0
    %1420 = vmatpush1.xpose.msra.mxu0 0.0
    %1421 = vmatprep.subr.mxu0 0.0
    %1422 = vmatpush1.xpose.msra.mxu0 0.0
    %1423 = vmatprep.subr.mxu0 0.0
    %1424 = vmatpush1.xpose.msra.mxu0 0.0
    %1425 = vmatprep.subr.mxu0 0.0
    %1426 = vmatpush1.xpose.msra.mxu0 0.0
    %1427 = vmatprep.subr.mxu0 0.0
    %1428 = vmatpush1.xpose.msra.mxu0 0.0
    %1429 = vmatprep.subr.mxu0 0.0
    %1430 = vmatpush1.xpose.msra.mxu0 0.0
    %1431 = vmatprep.subr.mxu0 0.0
    %1432 = vmatpush1.xpose.msra.mxu0 0.0
    %1433 = vmatprep.subr.mxu0 0.0
    %1434 = vmatpush1.xpose.msra.mxu0 0.0
    %1435 = vmatprep.subr.mxu0 0.0
    %1436 = vmatpush1.xpose.msra.mxu0 0.0
    %1437 = vmatprep.subr.mxu0 0.0
    %1438 = vmatpush1.xpose.msra.mxu0 0.0
    %1439 = vmatprep.subr.mxu0 0.0
    %1440 = vmatpush1.xpose.msra.mxu0 0.0
    %1441 = vmatprep.subr.mxu0 0.0
    %1442 = vmatpush1.xpose.msra.mxu0 0.0
    %1443 = vmatprep.subr.mxu0 0.0
    %1444 = vmatpush1.xpose.msra.mxu0 0.0
    %1445 = vmatprep.subr.mxu0 0.0
    %1446 = vmatpush1.xpose.msra.mxu0 0.0
    %1447 = vmatprep.subr.mxu0 0.0
    %1448 = vmatpush1.xpose.msra.mxu0 0.0
    %1449 = vmatprep.subr.mxu0 0.0
    %1450 = vmatpush1.xpose.msra.mxu0 0.0
    %1451 = vmatprep.subr.mxu0 0.0
    %1452 = vmatpush1.xpose.msra.mxu0 0.0
    %1453 = vmatprep.subr.mxu0 0.0
    %1454 = vmatpush1.xpose.msra.mxu0 0.0
    %1455 = vmatprep.subr.mxu0 0.0
    %1456 = vmatpush1.xpose.msra.mxu0 0.0
    %1457 = vmatprep.subr.mxu0 0.0
    %1458 = vmatpush1.xpose.msra.mxu0 0.0
    %1459 = vmatprep.subr.mxu0 0.0
    %1460 = vmatpush1.xpose.msra.mxu0 0.0
    %1461 = vmatprep.subr.mxu0 0.0
    %1462 = vmatpush1.xpose.msra.mxu0 0.0
    %1463 = vmatprep.subr.mxu0 0.0
    %1464 = vmatpush1.xpose.msra.mxu0 0.0
    %1465 = vmatprep.subr.mxu0 0.0
    %1466 = vmatpush1.xpose.msra.mxu0 0.0
    %1467 = vmatprep.subr.mxu0 0.0
    %1468 = vmatpush1.xpose.msra.mxu0 0.0
    %1469 = vmatprep.subr.mxu0 0.0
    %1470 = vmatpush1.xpose.msra.mxu0 0.0
    %1471 = vmatprep.mubr.f32.mxu0 0.0
    %1472 = vmatmul.mubr.f32.gmra.mrb[0].mxu0 %v1399
    %v1473 = vpop.f32.mrb[0].mxu0
    %v1474 = vadd.f32 %v57, %v1473
    %v1475 = vpop.f32.mrb[0].mxu0
    %1476 = vmatprep.mubr.f32.mxu0 0.0
    %1477 = vmatmul.mubr.f32.gmra.mrb[0].mxu0 %v1401
    %v1478 = vpop.f32.mrb[0].mxu0
    %v1479 = vadd.f32 %v58, %v1478
    %v1480 = vpop.f32.mrb[0].mxu0
    %1481 = vdwg.mxu0
    %v1482 = vsel %vm250, %v1474, -inf
    %1483 = vmax.xlane.f32.xlu0 %v1482
    %v1484 = vpop.xlane.xlu0 %1483
    %v1485 = vsel %vm254, %v1479, -inf
    %1486 = vmax.xlane.f32.xlu0 %v1485
    %v1487 = vpop.xlane.xlu0 %1486
    %v1488 = vsub.f32 %v1474, %v1484
    %v1489 = vsub.f32 %v1479, %v1487
    %v1490 = vmul.f32 %v1488, 1.442695
    %v1491 = vpow.pop %v1490
    %v1492 = vmul.f32 %v1489, 1.442695
    %v1493 = vpow.pop %v1492
    %v1494 = vsel %vm250, %v1491, 0.0
    %1495 = vadd.xlane.f32.xlu0 %v1494
    %v1496 = vpop.xlane.xlu0 %1495
    %v1497 = vsel %vm254, %v1493, 0.0
    %1498 = vadd.xlane.f32.xlu0 %v1497
    %v1499 = vpop.xlane.xlu0 %1498
    %v1500 = vrcp.pop %v1496
    %v1501 = vmul.f32 %v1491, %v1500
    %v1502 = vrcp.pop %v1499
    %v1503 = vmul.f32 %v1493, %v1502
    %1504 = vrot.lane.b32.xlu0 %v1178, 48
    %v1505 = vpop.permute.xlu0 %1504
    %1506 = vrot.lane.b32.xlu0 %v1183, 48
    %v1507 = vpop.permute.xlu0 %1506
    %v1510 = vsel %vm250, %v1501, 0
    %v1513 = vsel %vm250, %v1503, 0
    %v1515 = vsel %vm45, %v1507, 0
    %1517 = vmatprep.subr.mxu0 0.0
    %1518 = vmatpush1.msra.mxu0 %v1505
    %1519 = vmatprep.subr.mxu0 0.0
    %1520 = vmatpush1.msra.mxu0 %v1515
    %1521 = vmatprep.subr.mxu0 0.0
    %1522 = vmatpush1.msra.mxu0 0.0
    %1523 = vmatprep.subr.mxu0 0.0
    %1524 = vmatpush1.msra.mxu0 0.0
    %1525 = vmatprep.subr.mxu0 0.0
    %1526 = vmatpush1.msra.mxu0 0.0
    %1527 = vmatprep.subr.mxu0 0.0
    %1528 = vmatpush1.msra.mxu0 0.0
    %1529 = vmatprep.subr.mxu0 0.0
    %1530 = vmatpush1.msra.mxu0 0.0
    %1531 = vmatprep.subr.mxu0 0.0
    %1532 = vmatpush1.msra.mxu0 0.0
    %1533 = vmatprep.subr.mxu0 0.0
    %1534 = vmatpush1.msra.mxu0 0.0
    %1535 = vmatprep.subr.mxu0 0.0
    %1536 = vmatpush1.msra.mxu0 0.0
    %1537 = vmatprep.subr.mxu0 0.0
    %1538 = vmatpush1.msra.mxu0 0.0
    %1539 = vmatprep.subr.mxu0 0.0
    %1540 = vmatpush1.msra.mxu0 0.0
    %1541 = vmatprep.subr.mxu0 0.0
    %1542 = vmatpush1.msra.mxu0 0.0
    %1543 = vmatprep.subr.mxu0 0.0
    %1544 = vmatpush1.msra.mxu0 0.0
    %1545 = vmatprep.subr.mxu0 0.0
    %1546 = vmatpush1.msra.mxu0 0.0
    %1547 = vmatprep.subr.mxu0 0.0
    %1548 = vmatpush1.msra.mxu0 0.0
    %1549 = vmatprep.subr.mxu0 0.0
    %1550 = vmatpush1.msra.mxu0 0.0
    %1551 = vmatprep.subr.mxu0 0.0
    %1552 = vmatpush1.msra.mxu0 0.0
    %1553 = vmatprep.subr.mxu0 0.0
    %1554 = vmatpush1.msra.mxu0 0.0
    %1555 = vmatprep.subr.mxu0 0.0
    %1556 = vmatpush1.msra.mxu0 0.0
    %1557 = vmatprep.subr.mxu0 0.0
    %1558 = vmatpush1.msra.mxu0 0.0
    %1559 = vmatprep.subr.mxu0 0.0
    %1560 = vmatpush1.msra.mxu0 0.0
    %1561 = vmatprep.subr.mxu0 0.0
    %1562 = vmatpush1.msra.mxu0 0.0
    %1563 = vmatprep.subr.mxu0 0.0
    %1564 = vmatpush1.msra.mxu0 0.0
    %1565 = vmatprep.subr.mxu0 0.0
    %1566 = vmatpush1.msra.mxu0 0.0
    %1567 = vmatprep.subr.mxu0 0.0
    %1568 = vmatpush1.msra.mxu0 0.0
    %1569 = vmatprep.subr.mxu0 0.0
    %1570 = vmatpush1.msra.mxu0 0.0
    %1571 = vmatprep.subr.mxu0 0.0
    %1572 = vmatpush1.msra.mxu0 0.0
    %1573 = vmatprep.subr.mxu0 0.0
    %1574 = vmatpush1.msra.mxu0 0.0
    %1575 = vmatprep.subr.mxu0 0.0
    %1576 = vmatpush1.msra.mxu0 0.0
    %1577 = vmatprep.subr.mxu0 0.0
    %1578 = vmatpush1.msra.mxu0 0.0
    %1579 = vmatprep.subr.mxu0 0.0
    %1580 = vmatpush1.msra.mxu0 0.0
    %1581 = vmatprep.mubr.f32.mxu0 0.0
    %1582 = vmatmul.mubr.f32.gmra.mrb[0].mxu0 %v1510
    %v1583 = vpop.f32.mrb[0].mxu0
    %v1584 = vadd.f32 0.0, %v1583
    %v1585 = vpop.f32.mrb[0].mxu0
    %1586 = vmatprep.mubr.f32.mxu0 0.0
    %1587 = vmatmul.mubr.f32.gmra.mrb[0].mxu0 %v1513
    %v1588 = vpop.f32.mrb[0].mxu0
    %v1589 = vadd.f32 0.0, %v1588
    %v1590 = vpop.f32.mrb[0].mxu0
    %1591 = vdwg.mxu0
    %1594 = vrot.lane.b32.xlu0 %v1091, 32
    %v1595 = vpop.permute.xlu0 %1594
    %1596 = vrot.lane.b32.xlu0 %v1092, 32
    %v1597 = vpop.permute.xlu0 %1596
    %v1601 = vsel %vm164, %v1584, 0
    %v1604 = vsel %vm164, %v1589, 0
    %1606 = vmatprep.subr.mxu0 0.0
    %1607 = vmatpush1.msra.mxu0 %v1595
    %1608 = vmatprep.subr.mxu0 0.0
    %1609 = vmatpush1.msra.mxu0 %v1597
    %1610 = vmatprep.subr.mxu0 0.0
    %1611 = vmatpush1.msra.mxu0 0.0
    %1612 = vmatprep.subr.mxu0 0.0
    %1613 = vmatpush1.msra.mxu0 0.0
    %1614 = vmatprep.subr.mxu0 0.0
    %1615 = vmatpush1.msra.mxu0 0.0
    %1616 = vmatprep.subr.mxu0 0.0
    %1617 = vmatpush1.msra.mxu0 0.0
    %1618 = vmatprep.subr.mxu0 0.0
    %1619 = vmatpush1.msra.mxu0 0.0
    %1620 = vmatprep.subr.mxu0 0.0
    %1621 = vmatpush1.msra.mxu0 0.0
    %1622 = vmatprep.subr.mxu0 0.0
    %1623 = vmatpush1.msra.mxu0 0.0
    %1624 = vmatprep.subr.mxu0 0.0
    %1625 = vmatpush1.msra.mxu0 0.0
    %1626 = vmatprep.subr.mxu0 0.0
    %1627 = vmatpush1.msra.mxu0 0.0
    %1628 = vmatprep.subr.mxu0 0.0
    %1629 = vmatpush1.msra.mxu0 0.0
    %1630 = vmatprep.subr.mxu0 0.0
    %1631 = vmatpush1.msra.mxu0 0.0
    %1632 = vmatprep.subr.mxu0 0.0
    %1633 = vmatpush1.msra.mxu0 0.0
    %1634 = vmatprep.subr.mxu0 0.0
    %1635 = vmatpush1.msra.mxu0 0.0
    %1636 = vmatprep.subr.mxu0 0.0
    %1637 = vmatpush1.msra.mxu0 0.0
    %1638 = vmatprep.subr.mxu0 0.0
    %1639 = vmatpush1.msra.mxu0 0.0
    %1640 = vmatprep.subr.mxu0 0.0
    %1641 = vmatpush1.msra.mxu0 0.0
    %1642 = vmatprep.subr.mxu0 0.0
    %1643 = vmatpush1.msra.mxu0 0.0
    %1644 = vmatprep.subr.mxu0 0.0
    %1645 = vmatpush1.msra.mxu0 0.0
    %1646 = vmatprep.subr.mxu0 0.0
    %1647 = vmatpush1.msra.mxu0 0.0
    %1648 = vmatprep.subr.mxu0 0.0
    %1649 = vmatpush1.msra.mxu0 0.0
    %1650 = vmatprep.subr.mxu0 0.0
    %1651 = vmatpush1.msra.mxu0 0.0
    %1652 = vmatprep.subr.mxu0 0.0
    %1653 = vmatpush1.msra.mxu0 0.0
    %1654 = vmatprep.subr.mxu0 0.0
    %1655 = vmatpush1.msra.mxu0 0.0
    %1656 = vmatprep.subr.mxu0 0.0
    %1657 = vmatpush1.msra.mxu0 0.0
    %1658 = vmatprep.subr.mxu0 0.0
    %1659 = vmatpush1.msra.mxu0 0.0
    %1660 = vmatprep.subr.mxu0 0.0
    %1661 = vmatpush1.msra.mxu0 0.0
    %1662 = vmatprep.subr.mxu0 0.0
    %1663 = vmatpush1.msra.mxu0 0.0
    %1664 = vmatprep.subr.mxu0 0.0
    %1665 = vmatpush1.msra.mxu0 0.0
    %1666 = vmatprep.subr.mxu0 0.0
    %1667 = vmatpush1.msra.mxu0 0.0
    %1668 = vmatprep.subr.mxu0 0.0
    %1669 = vmatpush1.msra.mxu0 0.0
    %1670 = vmatprep.mubr.f32.mxu0 0.0
    %1671 = vmatmul.mubr.f32.gmra.mrb[0].mxu0 %v1601
    %v1672 = vpop.f32.mrb[0].mxu0
    %v1673 = vadd.f32 0.0, %v1672
    %v1674 = vpop.f32.mrb[0].mxu0
    %1675 = vmatprep.mubr.f32.mxu0 0.0
    %1676 = vmatmul.mubr.f32.gmra.mrb[0].mxu0 %v1604
    %v1677 = vpop.f32.mrb[0].mxu0
    %v1678 = vadd.f32 0.0, %v1677
    %v1679 = vpop.f32.mrb[0].mxu0
    %1680 = vdwg.mxu0
    %1683 = vrot.lane.b32.xlu0 %v1389, 32
    %v1684 = vpop.permute.xlu0 %1683
    %1685 = vrot.lane.b32.xlu0 %v1390, 32
    %v1686 = vpop.permute.xlu0 %1685
    %v1690 = vsel %vm164, %v1381, 0
    %v1693 = vsel %vm164, %v1386, 0
    %1695 = vmatprep.subr.mxu0 0.0
    %1696 = vmatpush1.msra.mxu0 %v1684
    %1697 = vmatprep.subr.mxu0 0.0
    %1698 = vmatpush1.msra.mxu0 %v1686
    %1699 = vmatprep.subr.mxu0 0.0
    %1700 = vmatpush1.msra.mxu0 0.0
    %1701 = vmatprep.subr.mxu0 0.0
    %1702 = vmatpush1.msra.mxu0 0.0
    %1703 = vmatprep.subr.mxu0 0.0
    %1704 = vmatpush1.msra.mxu0 0.0
    %1705 = vmatprep.subr.mxu0 0.0
    %1706 = vmatpush1.msra.mxu0 0.0
    %1707 = vmatprep.subr.mxu0 0.0
    %1708 = vmatpush1.msra.mxu0 0.0
    %1709 = vmatprep.subr.mxu0 0.0
    %1710 = vmatpush1.msra.mxu0 0.0
    %1711 = vmatprep.subr.mxu0 0.0
    %1712 = vmatpush1.msra.mxu0 0.0
    %1713 = vmatprep.subr.mxu0 0.0
    %1714 = vmatpush1.msra.mxu0 0.0
    %1715 = vmatprep.subr.mxu0 0.0
    %1716 = vmatpush1.msra.mxu0 0.0
    %1717 = vmatprep.subr.mxu0 0.0
    %1718 = vmatpush1.msra.mxu0 0.0
    %1719 = vmatprep.subr.mxu0 0.0
    %1720 = vmatpush1.msra.mxu0 0.0
    %1721 = vmatprep.subr.mxu0 0.0
    %1722 = vmatpush1.msra.mxu0 0.0
    %1723 = vmatprep.subr.mxu0 0.0
    %1724 = vmatpush1.msra.mxu0 0.0
    %1725 = vmatprep.subr.mxu0 0.0
    %1726 = vmatpush1.msra.mxu0 0.0
    %1727 = vmatprep.subr.mxu0 0.0
    %1728 = vmatpush1.msra.mxu0 0.0
    %1729 = vmatprep.subr.mxu0 0.0
    %1730 = vmatpush1.msra.mxu0 0.0
    %1731 = vmatprep.subr.mxu0 0.0
    %1732 = vmatpush1.msra.mxu0 0.0
    %1733 = vmatprep.subr.mxu0 0.0
    %1734 = vmatpush1.msra.mxu0 0.0
    %1735 = vmatprep.subr.mxu0 0.0
    %1736 = vmatpush1.msra.mxu0 0.0
    %1737 = vmatprep.subr.mxu0 0.0
    %1738 = vmatpush1.msra.mxu0 0.0
    %1739 = vmatprep.subr.mxu0 0.0
    %1740 = vmatpush1.msra.mxu0 0.0
    %1741 = vmatprep.subr.mxu0 0.0
    %1742 = vmatpush1.msra.mxu0 0.0
    %1743 = vmatprep.subr.mxu0 0.0
    %1744 = vmatpush1.msra.mxu0 0.0
    %1745 = vmatprep.subr.mxu0 0.0
    %1746 = vmatpush1.msra.mxu0 0.0
    %1747 = vmatprep.subr.mxu0 0.0
    %1748 = vmatpush1.msra.mxu0 0.0
    %1749 = vmatprep.subr.mxu0 0.0
    %1750 = vmatpush1.msra.mxu0 0.0
    %1751 = vmatprep.subr.mxu0 0.0
    %1752 = vmatpush1.msra.mxu0 0.0
    %1753 = vmatprep.subr.mxu0 0.0
    %1754 = vmatpush1.msra.mxu0 0.0
    %1755 = vmatprep.subr.mxu0 0.0
    %1756 = vmatpush1.msra.mxu0 0.0
    %1757 = vmatprep.subr.mxu0 0.0
    %1758 = vmatpush1.msra.mxu0 0.0
    %1759 = vmatprep.mubr.f32.mxu0 0.0
    %1760 = vmatmul.mubr.f32.gmra.mrb[0].mxu0 %v1690
    %v1761 = vpop.f32.mrb[0].mxu0
    %v1762 = vadd.f32 %v1673, %v1761
    %v1763 = vpop.f32.mrb[0].mxu0
    %1764 = vmatprep.mubr.f32.mxu0 0.0
    %1765 = vmatmul.mubr.f32.gmra.mrb[0].mxu0 %v1693
    %v1766 = vpop.f32.mrb[0].mxu0
    %v1767 = vadd.f32 %v1678, %v1766
    %v1768 = vpop.f32.mrb[0].mxu0
    %1769 = vdwg.mxu0
    %v1770 = vadd.f32 %v1762, %v1098
    %v1771 = vadd.f32 %v1767, %v1098
    %v1772 = vadd.f32 %v1086, %v1770
    %v1773 = vadd.f32 %v1087, %v1771
    %v1774 = vsel %vm75, %v1772, 0.0
    %1775 = vadd.xlane.f32.xlu0 %v1774
    %v1776 = vpop.xlane.xlu0 %1775
    %v1777 = vsel %vm750, %v1773, 0.0
    %1778 = vadd.xlane.f32.xlu0 %v1777
    %v1779 = vpop.xlane.xlu0 %1778
    %v1780 = vmul.f32 %v1776, %v754
    %v1781 = vmul.f32 %v1779, %v754
    %v1782 = vsub.f32 %v1772, %v1780
    %v1783 = vsub.f32 %v1773, %v1781
    %v1784 = vmul.f32 %v1782, %v1782
    %v1785 = vmul.f32 %v1783, %v1783
    %v1786 = vsel %vm75, %v1784, 0.0
    %1787 = vadd.xlane.f32.xlu0 %v1786
    %v1788 = vpop.xlane.xlu0 %1787
    %v1789 = vsel %vm750, %v1785, 0.0
    %1790 = vadd.xlane.f32.xlu0 %v1789
    %v1791 = vpop.xlane.xlu0 %1790
    %v1792 = vmul.f32 %v1788, %v754
    %v1793 = vmul.f32 %v1791, %v754
    %v1794 = vadd.f32 %v1792, 1e-05
    %v1795 = vadd.f32 %v1793, 1e-05
    %v1796 = vrsqrt.pop %v1794
    %v1797 = vrsqrt.pop %v1795
    %v1798 = vmul.f32 %v1782, %v1796
    %v1799 = vmul.f32 %v1783, %v1797
    %v1800 = vmul.f32 %v1798, %v1101
    %v1801 = vmul.f32 %v1799, %v1101
    %v1802 = vadd.f32 %v1800, %v1102
    %v1803 = vadd.f32 %v1801, %v1102
    %v1805 = vsel %vm75, %v1802, 0
    %v1808 = vsel %vm75, %v1803, 0
    %1810 = vmatprep.subr.mxu0 0.0
    %1811 = vmatpush1.msra.mxu0 %v1093
    %1812 = vmatprep.subr.mxu0 0.0
    %1813 = vmatpush1.msra.mxu0 %v1094
    %1814 = vmatprep.subr.mxu0 0.0
    %1815 = vmatpush1.msra.mxu0 %v1095
    %1816 = vmatprep.subr.mxu0 0.0
    %1817 = vmatpush1.msra.mxu0 %v1096
    %1818 = vmatprep.subr.mxu0 0.0
    %1819 = vmatpush1.msra.mxu0 0.0
    %1820 = vmatprep.subr.mxu0 0.0
    %1821 = vmatpush1.msra.mxu0 0.0
    %1822 = vmatprep.subr.mxu0 0.0
    %1823 = vmatpush1.msra.mxu0 0.0
    %1824 = vmatprep.subr.mxu0 0.0
    %1825 = vmatpush1.msra.mxu0 0.0
    %1826 = vmatprep.subr.mxu0 0.0
    %1827 = vmatpush1.msra.mxu0 0.0
    %1828 = vmatprep.subr.mxu0 0.0
    %1829 = vmatpush1.msra.mxu0 0.0
    %1830 = vmatprep.subr.mxu0 0.0
    %1831 = vmatpush1.msra.mxu0 0.0
    %1832 = vmatprep.subr.mxu0 0.0
    %1833 = vmatpush1.msra.mxu0 0.0
    %1834 = vmatprep.subr.mxu0 0.0
    %1835 = vmatpush1.msra.mxu0 0.0
    %1836 = vmatprep.subr.mxu0 0.0
    %1837 = vmatpush1.msra.mxu0 0.0
    %1838 = vmatprep.subr.mxu0 0.0
    %1839 = vmatpush1.msra.mxu0 0.0
    %1840 = vmatprep.subr.mxu0 0.0
    %1841 = vmatpush1.msra.mxu0 0.0
    %1842 = vmatprep.subr.mxu0 0.0
    %1843 = vmatpush1.msra.mxu0 0.0
    %1844 = vmatprep.subr.mxu0 0.0
    %1845 = vmatpush1.msra.mxu0 0.0
    %1846 = vmatprep.subr.mxu0 0.0
    %1847 = vmatpush1.msra.mxu0 0.0
    %1848 = vmatprep.subr.mxu0 0.0
    %1849 = vmatpush1.msra.mxu0 0.0
    %1850 = vmatprep.subr.mxu0 0.0
    %1851 = vmatpush1.msra.mxu0 0.0
    %1852 = vmatprep.subr.mxu0 0.0
    %1853 = vmatpush1.msra.mxu0 0.0
    %1854 = vmatprep.subr.mxu0 0.0
    %1855 = vmatpush1.msra.mxu0 0.0
    %1856 = vmatprep.subr.mxu0 0.0
    %1857 = vmatpush1.msra.mxu0 0.0
    %1858 = vmatprep.subr.mxu0 0.0
    %1859 = vmatpush1.msra.mxu0 0.0
    %1860 = vmatprep.subr.mxu0 0.0
    %1861 = vmatpush1.msra.mxu0 0.0
    %1862 = vmatprep.subr.mxu0 0.0
    %1863 = vmatpush1.msra.mxu0 0.0
    %1864 = vmatprep.subr.mxu0 0.0
    %1865 = vmatpush1.msra.mxu0 0.0
    %1866 = vmatprep.subr.mxu0 0.0
    %1867 = vmatpush1.msra.mxu0 0.0
    %1868 = vmatprep.subr.mxu0 0.0
    %1869 = vmatpush1.msra.mxu0 0.0
    %1870 = vmatprep.subr.mxu0 0.0
    %1871 = vmatpush1.msra.mxu0 0.0
    %1872 = vmatprep.subr.mxu0 0.0
    %1873 = vmatpush1.msra.mxu0 0.0
    %1874 = vmatprep.mubr.f32.mxu0 0.0
    %1875 = vmatmul.mubr.f32.gmra.mrb[0].mxu0 %v1805
    %v1876 = vpop.f32.mrb[0].mxu0
    %v1877 = vadd.f32 %v1099, %v1876
    %v1878 = vpop.f32.mrb[0].mxu0
    %1879 = vmatprep.mubr.f32.mxu0 0.0
    %1880 = vmatmul.mubr.f32.gmra.mrb[0].mxu0 %v1808
    %v1881 = vpop.f32.mrb[0].mxu0
    %v1882 = vadd.f32 %v1099, %v1881
    %v1883 = vpop.f32.mrb[0].mxu0
    %1884 = vdwg.mxu0
    %v1885 = vmax.f32 %v1877, 0.0
    %v1886 = vmax.f32 %v1882, 0.0
    %1889 = vrot.lane.b32.xlu0 %v1885, 96
    %v1890 = vpop.permute.xlu0 %1889
    %1891 = vrot.lane.b32.xlu0 %v1886, 96
    %v1892 = vpop.permute.xlu0 %1891
    %1897 = vrot.lane.b32.xlu0 %v1093, 32
    %v1898 = vpop.permute.xlu0 %1897
    %1899 = vrot.lane.b32.xlu0 %v1094, 32
    %v1900 = vpop.permute.xlu0 %1899
    %1901 = vrot.lane.b32.xlu0 %v1095, 32
    %v1902 = vpop.permute.xlu0 %1901
    %1903 = vrot.lane.b32.xlu0 %v1096, 32
    %v1904 = vpop.permute.xlu0 %1903
    %v1909 = vsel %vm75, %v1890, 0
    %v1911 = vsel %vm75, %v1892, 0
    %1913 = vmatprep.subr.mxu0 0.0
    %1914 = vmatpush1.msra.mxu0 %v1898
    %1915 = vmatprep.subr.mxu0 0.0
    %1916 = vmatpush1.msra.mxu0 %v1900
    %1917 = vmatprep.subr.mxu0 0.0
    %1918 = vmatpush1.msra.mxu0 %v1902
    %1919 = vmatprep.subr.mxu0 0.0
    %1920 = vmatpush1.msra.mxu0 %v1904
    %1921 = vmatprep.subr.mxu0 0.0
    %1922 = vmatpush1.msra.mxu0 0.0
    %1923 = vmatprep.subr.mxu0 0.0
    %1924 = vmatpush1.msra.mxu0 0.0
    %1925 = vmatprep.subr.mxu0 0.0
    %1926 = vmatpush1.msra.mxu0 0.0
    %1927 = vmatprep.subr.mxu0 0.0
    %1928 = vmatpush1.msra.mxu0 0.0
    %1929 = vmatprep.subr.mxu0 0.0
    %1930 = vmatpush1.msra.mxu0 0.0
    %1931 = vmatprep.subr.mxu0 0.0
    %1932 = vmatpush1.msra.mxu0 0.0
    %1933 = vmatprep.subr.mxu0 0.0
    %1934 = vmatpush1.msra.mxu0 0.0
    %1935 = vmatprep.subr.mxu0 0.0
    %1936 = vmatpush1.msra.mxu0 0.0
    %1937 = vmatprep.subr.mxu0 0.0
    %1938 = vmatpush1.msra.mxu0 0.0
    %1939 = vmatprep.subr.mxu0 0.0
    %1940 = vmatpush1.msra.mxu0 0.0
    %1941 = vmatprep.subr.mxu0 0.0
    %1942 = vmatpush1.msra.mxu0 0.0
    %1943 = vmatprep.subr.mxu0 0.0
    %1944 = vmatpush1.msra.mxu0 0.0
    %1945 = vmatprep.subr.mxu0 0.0
    %1946 = vmatpush1.msra.mxu0 0.0
    %1947 = vmatprep.subr.mxu0 0.0
    %1948 = vmatpush1.msra.mxu0 0.0
    %1949 = vmatprep.subr.mxu0 0.0
    %1950 = vmatpush1.msra.mxu0 0.0
    %1951 = vmatprep.subr.mxu0 0.0
    %1952 = vmatpush1.msra.mxu0 0.0
    %1953 = vmatprep.subr.mxu0 0.0
    %1954 = vmatpush1.msra.mxu0 0.0
    %1955 = vmatprep.subr.mxu0 0.0
    %1956 = vmatpush1.msra.mxu0 0.0
    %1957 = vmatprep.subr.mxu0 0.0
    %1958 = vmatpush1.msra.mxu0 0.0
    %1959 = vmatprep.subr.mxu0 0.0
    %1960 = vmatpush1.msra.mxu0 0.0
    %1961 = vmatprep.subr.mxu0 0.0
    %1962 = vmatpush1.msra.mxu0 0.0
    %1963 = vmatprep.subr.mxu0 0.0
    %1964 = vmatpush1.msra.mxu0 0.0
    %1965 = vmatprep.subr.mxu0 0.0
    %1966 = vmatpush1.msra.mxu0 0.0
    %1967 = vmatprep.subr.mxu0 0.0
    %1968 = vmatpush1.msra.mxu0 0.0
    %1969 = vmatprep.subr.mxu0 0.0
    %1970 = vmatpush1.msra.mxu0 0.0
    %1971 = vmatprep.subr.mxu0 0.0
    %1972 = vmatpush1.msra.mxu0 0.0
    %1973 = vmatprep.subr.mxu0 0.0
    %1974 = vmatpush1.msra.mxu0 0.0
    %1975 = vmatprep.subr.mxu0 0.0
    %1976 = vmatpush1.msra.mxu0 0.0
    %1977 = vmatprep.mubr.f32.mxu0 0.0
    %1978 = vmatmul.mubr.f32.gmra.mrb[0].mxu0 %v1909
    %v1979 = vpop.f32.mrb[0].mxu0
    %v1980 = vadd.f32 0.0, %v1979
    %v1981 = vpop.f32.mrb[0].mxu0
    %1982 = vmatprep.mubr.f32.mxu0 0.0
    %1983 = vmatmul.mubr.f32.gmra.mrb[0].mxu0 %v1911
    %v1984 = vpop.f32.mrb[0].mxu0
    %v1985 = vpop.f32.mrb[0].mxu0
    %1986 = vdwg.mxu0
    %1987 = vrot.lane.b32.xlu0 %v1093, 64
    %v1988 = vpop.permute.xlu0 %1987
    %1989 = vrot.lane.b32.xlu0 %v1094, 64
    %v1990 = vpop.permute.xlu0 %1989
    %1991 = vrot.lane.b32.xlu0 %v1095, 64
    %v1992 = vpop.permute.xlu0 %1991
    %1993 = vrot.lane.b32.xlu0 %v1096, 64
    %v1994 = vpop.permute.xlu0 %1993
    %v1999 = vsel %vm75, %v1885, 0
    %v2001 = vsel %vm75, %v1886, 0
    %2003 = vmatprep.subr.mxu0 0.0
    %2004 = vmatpush1.msra.mxu0 %v1988
    %2005 = vmatprep.subr.mxu0 0.0
    %2006 = vmatpush1.msra.mxu0 %v1990
    %2007 = vmatprep.subr.mxu0 0.0
    %2008 = vmatpush1.msra.mxu0 %v1992
    %2009 = vmatprep.subr.mxu0 0.0
    %2010 = vmatpush1.msra.mxu0 %v1994
    %2011 = vmatprep.subr.mxu0 0.0
    %2012 = vmatpush1.msra.mxu0 0.0
    %2013 = vmatprep.subr.mxu0 0.0
    %2014 = vmatpush1.msra.mxu0 0.0
    %2015 = vmatprep.subr.mxu0 0.0
    %2016 = vmatpush1.msra.mxu0 0.0
    %2017 = vmatprep.subr.mxu0 0.0
    %2018 = vmatpush1.msra.mxu0 0.0
    %2019 = vmatprep.subr.mxu0 0.0
    %2020 = vmatpush1.msra.mxu0 0.0
    %2021 = vmatprep.subr.mxu0 0.0
    %2022 = vmatpush1.msra.mxu0 0.0
    %2023 = vmatprep.subr.mxu0 0.0
    %2024 = vmatpush1.msra.mxu0 0.0
    %2025 = vmatprep.subr.mxu0 0.0
    %2026 = vmatpush1.msra.mxu0 0.0
    %2027 = vmatprep.subr.mxu0 0.0
    %2028 = vmatpush1.msra.mxu0 0.0
    %2029 = vmatprep.subr.mxu0 0.0
    %2030 = vmatpush1.msra.mxu0 0.0
    %2031 = vmatprep.subr.mxu0 0.0
    %2032 = vmatpush1.msra.mxu0 0.0
    %2033 = vmatprep.subr.mxu0 0.0
    %2034 = vmatpush1.msra.mxu0 0.0
    %2035 = vmatprep.subr.mxu0 0.0
    %2036 = vmatpush1.msra.mxu0 0.0
    %2037 = vmatprep.subr.mxu0 0.0
    %2038 = vmatpush1.msra.mxu0 0.0
    %2039 = vmatprep.subr.mxu0 0.0
    %2040 = vmatpush1.msra.mxu0 0.0
    %2041 = vmatprep.subr.mxu0 0.0
    %2042 = vmatpush1.msra.mxu0 0.0
    %2043 = vmatprep.subr.mxu0 0.0
    %2044 = vmatpush1.msra.mxu0 0.0
    %2045 = vmatprep.subr.mxu0 0.0
    %2046 = vmatpush1.msra.mxu0 0.0
    %2047 = vmatprep.subr.mxu0 0.0
    %2048 = vmatpush1.msra.mxu0 0.0
    %2049 = vmatprep.subr.mxu0 0.0
    %2050 = vmatpush1.msra.mxu0 0.0
    %2051 = vmatprep.subr.mxu0 0.0
    %2052 = vmatpush1.msra.mxu0 0.0
    %2053 = vmatprep.subr.mxu0 0.0
    %2054 = vmatpush1.msra.mxu0 0.0
    %2055 = vmatprep.subr.mxu0 0.0
    %2056 = vmatpush1.msra.mxu0 0.0
    %2057 = vmatprep.subr.mxu0 0.0
    %2058 = vmatpush1.msra.mxu0 0.0
    %2059 = vmatprep.subr.mxu0 0.0
    %2060 = vmatpush1.msra.mxu0 0.0
    %2061 = vmatprep.subr.mxu0 0.0
    %2062 = vmatpush1.msra.mxu0 0.0
    %2063 = vmatprep.subr.mxu0 0.0
    %2064 = vmatpush1.msra.mxu0 0.0
    %2065 = vmatprep.subr.mxu0 0.0
    %2066 = vmatpush1.msra.mxu0 0.0
    %2067 = vmatprep.mubr.f32.mxu0 0.0
    %2068 = vmatmul.mubr.f32.gmra.mrb[0].mxu0 %v1999
    %v2069 = vpop.f32.mrb[0].mxu0
    %v2070 = vadd.f32 %v1980, %v2069
    %v2071 = vpop.f32.mrb[0].mxu0
    %2072 = vmatprep.mubr.f32.mxu0 0.0
    %2073 = vmatmul.mubr.f32.gmra.mrb[0].mxu0 %v2001
    %v2074 = vpop.f32.mrb[0].mxu0
    %v2075 = vpop.f32.mrb[0].mxu0
    %2076 = vdwg.mxu0
    %v2077 = vadd.f32 %v2070, %v1100
    %v2078 = vadd.f32 %v1802, %v2077
    %v2079 = vsel %vm75, %v2078, 0.0
    %2080 = vadd.xlane.f32.xlu0 %v2079
    %v2081 = vpop.xlane.xlu0 %2080
    %v2082 = vmul.f32 %v2081, %v754
    %v2083 = vsub.f32 %v2078, %v2082
    %v2084 = vmul.f32 %v2083, %v2083
    %v2085 = vsel %vm75, %v2084, 0.0
    %2086 = vadd.xlane.f32.xlu0 %v2085
    %v2087 = vpop.xlane.xlu0 %2086
    %v2088 = vmul.f32 %v2087, %v754
    %v2089 = vadd.f32 %v2088, 1e-05
    %v2090 = vrsqrt.pop %v2089
    %v2091 = vmul.f32 %v2083, %v2090
    %v2092 = vmul.f32 %v2091, %v1103
    %v2093 = vadd.f32 %v2092, %v1104
    %s2094 = scalar_lea.vmem [#allocation4], 160
    %v2095 = vld [vmem:[%s2094] sm:$0xff]
    %v2096 = vld [vmem:[%s2094 + $0x10] sm:$0xff]
    %v2097 = vld [vmem:[%s2094 + $0x20] sm:$0xff]
    %v2098 = vld [vmem:[%s2094 + $0x30] sm:$0xff]
    %v2099 = vld [vmem:[%s2094 + $0x40] ss:$0 sm:$0xff]
    %v2101 = vsel %vm75, %v2093, 0
    %2103 = vmatprep.subr.mxu0 0.0
    %2104 = vmatpush1.msra.mxu0 %v2095
    %2105 = vmatprep.subr.mxu0 0.0
    %2106 = vmatpush1.msra.mxu0 %v2096
    %2107 = vmatprep.subr.mxu0 0.0
    %2108 = vmatpush1.msra.mxu0 %v2097
    %2109 = vmatprep.subr.mxu0 0.0
    %2110 = vmatpush1.msra.mxu0 %v2098
    %2111 = vmatprep.subr.mxu0 0.0
    %2112 = vmatpush1.msra.mxu0 0.0
    %2113 = vmatprep.subr.mxu0 0.0
    %2114 = vmatpush1.msra.mxu0 0.0
    %2115 = vmatprep.subr.mxu0 0.0
    %2116 = vmatpush1.msra.mxu0 0.0
    %2117 = vmatprep.subr.mxu0 0.0
    %2118 = vmatpush1.msra.mxu0 0.0
    %2119 = vmatprep.subr.mxu0 0.0
    %2120 = vmatpush1.msra.mxu0 0.0
    %2121 = vmatprep.subr.mxu0 0.0
    %2122 = vmatpush1.msra.mxu0 0.0
    %2123 = vmatprep.subr.mxu0 0.0
    %2124 = vmatpush1.msra.mxu0 0.0
    %2125 = vmatprep.subr.mxu0 0.0
    %2126 = vmatpush1.msra.mxu0 0.0
    %2127 = vmatprep.subr.mxu0 0.0
    %2128 = vmatpush1.msra.mxu0 0.0
    %2129 = vmatprep.subr.mxu0 0.0
    %2130 = vmatpush1.msra.mxu0 0.0
    %2131 = vmatprep.subr.mxu0 0.0
    %2132 = vmatpush1.msra.mxu0 0.0
    %2133 = vmatprep.subr.mxu0 0.0
    %2134 = vmatpush1.msra.mxu0 0.0
    %2135 = vmatprep.subr.mxu0 0.0
    %2136 = vmatpush1.msra.mxu0 0.0
    %2137 = vmatprep.subr.mxu0 0.0
    %2138 = vmatpush1.msra.mxu0 0.0
    %2139 = vmatprep.subr.mxu0 0.0
    %2140 = vmatpush1.msra.mxu0 0.0
    %2141 = vmatprep.subr.mxu0 0.0
    %2142 = vmatpush1.msra.mxu0 0.0
    %2143 = vmatprep.subr.mxu0 0.0
    %2144 = vmatpush1.msra.mxu0 0.0
    %2145 = vmatprep.subr.mxu0 0.0
    %2146 = vmatpush1.msra.mxu0 0.0
    %2147 = vmatprep.subr.mxu0 0.0
    %2148 = vmatpush1.msra.mxu0 0.0
    %2149 = vmatprep.subr.mxu0 0.0
    %2150 = vmatpush1.msra.mxu0 0.0
    %2151 = vmatprep.subr.mxu0 0.0
    %2152 = vmatpush1.msra.mxu0 0.0
    %2153 = vmatprep.subr.mxu0 0.0
    %2154 = vmatpush1.msra.mxu0 0.0
    %2155 = vmatprep.subr.mxu0 0.0
    %2156 = vmatpush1.msra.mxu0 0.0
    %2157 = vmatprep.subr.mxu0 0.0
    %2158 = vmatpush1.msra.mxu0 0.0
    %2159 = vmatprep.subr.mxu0 0.0
    %2160 = vmatpush1.msra.mxu0 0.0
    %2161 = vmatprep.subr.mxu0 0.0
    %2162 = vmatpush1.msra.mxu0 0.0
    %2163 = vmatprep.subr.mxu0 0.0
    %2164 = vmatpush1.msra.mxu0 0.0
    %2165 = vmatprep.subr.mxu0 0.0
    %2166 = vmatpush1.msra.mxu0 0.0
    %2167 = vmatprep.mubr.f32.mxu0 0.0
    %2168 = vmatmul.mubr.f32.gmra.mrb[0].mxu0 %v2101
    %v2169 = vpop.f32.mrb[0].mxu0
    %v2170 = vadd.f32 %v2099, %v2169
    %v2171 = vpop.f32.mrb[0].mxu0
    %2172 = vdwg.mxu0
    %v2173 = vmax.f32 %v2170, 0.0
    %2178 = vrot.lane.b32.xlu0 %v2095, 96
    %v2179 = vpop.permute.xlu0 %2178
    %2180 = vrot.lane.b32.xlu0 %v2096, 96
    %v2181 = vpop.permute.xlu0 %2180
    %2182 = vrot.lane.b32.xlu0 %v2097, 96
    %v2183 = vpop.permute.xlu0 %2182
    %2184 = vrot.lane.b32.xlu0 %v2098, 96
    %v2185 = vpop.permute.xlu0 %2184
    %2191 = vrot.lane.b32.xlu0 %v2099, 96
    %v2192 = vpop.permute.xlu0 %2191
    %v2195 = vsel %vm75, %v2173, 0
    %2197 = vmatprep.subr.mxu0 0.0
    %2198 = vmatpush1.msra.mxu0 %v2179
    %2199 = vmatprep.subr.mxu0 0.0
    %2200 = vmatpush1.msra.mxu0 %v2181
    %2201 = vmatprep.subr.mxu0 0.0
    %2202 = vmatpush1.msra.mxu0 %v2183
    %2203 = vmatprep.subr.mxu0 0.0
    %2204 = vmatpush1.msra.mxu0 %v2185
    %2205 = vmatprep.subr.mxu0 0.0
    %2206 = vmatpush1.msra.mxu0 0.0
    %2207 = vmatprep.subr.mxu0 0.0
    %2208 = vmatpush1.msra.mxu0 0.0
    %2209 = vmatprep.subr.mxu0 0.0
    %2210 = vmatpush1.msra.mxu0 0.0
    %2211 = vmatprep.subr.mxu0 0.0
    %2212 = vmatpush1.msra.mxu0 0.0
    %2213 = vmatprep.subr.mxu0 0.0
    %2214 = vmatpush1.msra.mxu0 0.0
    %2215 = vmatprep.subr.mxu0 0.0
    %2216 = vmatpush1.msra.mxu0 0.0
    %2217 = vmatprep.subr.mxu0 0.0
    %2218 = vmatpush1.msra.mxu0 0.0
    %2219 = vmatprep.subr.mxu0 0.0
    %2220 = vmatpush1.msra.mxu0 0.0
    %2221 = vmatprep.subr.mxu0 0.0
    %2222 = vmatpush1.msra.mxu0 0.0
    %2223 = vmatprep.subr.mxu0 0.0
    %2224 = vmatpush1.msra.mxu0 0.0
    %2225 = vmatprep.subr.mxu0 0.0
    %2226 = vmatpush1.msra.mxu0 0.0
    %2227 = vmatprep.subr.mxu0 0.0
    %2228 = vmatpush1.msra.mxu0 0.0
    %2229 = vmatprep.subr.mxu0 0.0
    %2230 = vmatpush1.msra.mxu0 0.0
    %2231 = vmatprep.subr.mxu0 0.0
    %2232 = vmatpush1.msra.mxu0 0.0
    %2233 = vmatprep.subr.mxu0 0.0
    %2234 = vmatpush1.msra.mxu0 0.0
    %2235 = vmatprep.subr.mxu0 0.0
    %2236 = vmatpush1.msra.mxu0 0.0
    %2237 = vmatprep.subr.mxu0 0.0
    %2238 = vmatpush1.msra.mxu0 0.0
    %2239 = vmatprep.subr.mxu0 0.0
    %2240 = vmatpush1.msra.mxu0 0.0
    %2241 = vmatprep.subr.mxu0 0.0
    %2242 = vmatpush1.msra.mxu0 0.0
    %2243 = vmatprep.subr.mxu0 0.0
    %2244 = vmatpush1.msra.mxu0 0.0
    %2245 = vmatprep.subr.mxu0 0.0
    %2246 = vmatpush1.msra.mxu0 0.0
    %2247 = vmatprep.subr.mxu0 0.0
    %2248 = vmatpush1.msra.mxu0 0.0
    %2249 = vmatprep.subr.mxu0 0.0
    %2250 = vmatpush1.msra.mxu0 0.0
    %2251 = vmatprep.subr.mxu0 0.0
    %2252 = vmatpush1.msra.mxu0 0.0
    %2253 = vmatprep.subr.mxu0 0.0
    %2254 = vmatpush1.msra.mxu0 0.0
    %2255 = vmatprep.subr.mxu0 0.0
    %2256 = vmatpush1.msra.mxu0 0.0
    %2257 = vmatprep.subr.mxu0 0.0
    %2258 = vmatpush1.msra.mxu0 0.0
    %2259 = vmatprep.subr.mxu0 0.0
    %2260 = vmatpush1.msra.mxu0 0.0
    %2261 = vmatprep.mubr.f32.mxu0 0.0
    %2262 = vmatmul.mubr.f32.gmra.mrb[0].mxu0 %v2195
    %v2263 = vpop.f32.mrb[0].mxu0
    %v2264 = vadd.f32 %v2192, %v2263
    %v2265 = vpop.f32.mrb[0].mxu0
    %2266 = vdwg.mxu0
    %2267 = vrot.lane.b32.xlu0 %v2095, 64
    %v2268 = vpop.permute.xlu0 %2267
    %2269 = vrot.lane.b32.xlu0 %v2096, 64
    %v2270 = vpop.permute.xlu0 %2269
    %2271 = vrot.lane.b32.xlu0 %v2097, 64
    %v2272 = vpop.permute.xlu0 %2271
    %2273 = vrot.lane.b32.xlu0 %v2098, 64
    %v2274 = vpop.permute.xlu0 %2273
    %2279 = vrot.lane.b32.xlu0 %v2099, 64
    %v2280 = vpop.permute.xlu0 %2279
    %2282 = vmatprep.subr.mxu0 0.0
    %2283 = vmatpush1.msra.mxu0 %v2268
    %2284 = vmatprep.subr.mxu0 0.0
    %2285 = vmatpush1.msra.mxu0 %v2270
    %2286 = vmatprep.subr.mxu0 0.0
    %2287 = vmatpush1.msra.mxu0 %v2272
    %2288 = vmatprep.subr.mxu0 0.0
    %2289 = vmatpush1.msra.mxu0 %v2274
    %2290 = vmatprep.subr.mxu0 0.0
    %2291 = vmatpush1.msra.mxu0 0.0
    %2292 = vmatprep.subr.mxu0 0.0
    %2293 = vmatpush1.msra.mxu0 0.0
    %2294 = vmatprep.subr.mxu0 0.0
    %2295 = vmatpush1.msra.mxu0 0.0
    %2296 = vmatprep.subr.mxu0 0.0
    %2297 = vmatpush1.msra.mxu0 0.0
    %2298 = vmatprep.subr.mxu0 0.0
    %2299 = vmatpush1.msra.mxu0 0.0
    %2300 = vmatprep.subr.mxu0 0.0
    %2301 = vmatpush1.msra.mxu0 0.0
    %2302 = vmatprep.subr.mxu0 0.0
    %2303 = vmatpush1.msra.mxu0 0.0
    %2304 = vmatprep.subr.mxu0 0.0
    %2305 = vmatpush1.msra.mxu0 0.0
    %2306 = vmatprep.subr.mxu0 0.0
    %2307 = vmatpush1.msra.mxu0 0.0
    %2308 = vmatprep.subr.mxu0 0.0
    %2309 = vmatpush1.msra.mxu0 0.0
    %2310 = vmatprep.subr.mxu0 0.0
    %2311 = vmatpush1.msra.mxu0 0.0
    %2312 = vmatprep.subr.mxu0 0.0
    %2313 = vmatpush1.msra.mxu0 0.0
    %2314 = vmatprep.subr.mxu0 0.0
    %2315 = vmatpush1.msra.mxu0 0.0
    %2316 = vmatprep.subr.mxu0 0.0
    %2317 = vmatpush1.msra.mxu0 0.0
    %2318 = vmatprep.subr.mxu0 0.0
    %2319 = vmatpush1.msra.mxu0 0.0
    %2320 = vmatprep.subr.mxu0 0.0
    %2321 = vmatpush1.msra.mxu0 0.0
    %2322 = vmatprep.subr.mxu0 0.0
    %2323 = vmatpush1.msra.mxu0 0.0
    %2324 = vmatprep.subr.mxu0 0.0
    %2325 = vmatpush1.msra.mxu0 0.0
    %2326 = vmatprep.subr.mxu0 0.0
    %2327 = vmatpush1.msra.mxu0 0.0
    %2328 = vmatprep.subr.mxu0 0.0
    %2329 = vmatpush1.msra.mxu0 0.0
    %2330 = vmatprep.subr.mxu0 0.0
    %2331 = vmatpush1.msra.mxu0 0.0
    %2332 = vmatprep.subr.mxu0 0.0
    %2333 = vmatpush1.msra.mxu0 0.0
    %2334 = vmatprep.subr.mxu0 0.0
    %2335 = vmatpush1.msra.mxu0 0.0
    %2336 = vmatprep.subr.mxu0 0.0
    %2337 = vmatpush1.msra.mxu0 0.0
    %2338 = vmatprep.subr.mxu0 0.0
    %2339 = vmatpush1.msra.mxu0 0.0
    %2340 = vmatprep.subr.mxu0 0.0
    %2341 = vmatpush1.msra.mxu0 0.0
    %2342 = vmatprep.subr.mxu0 0.0
    %2343 = vmatpush1.msra.mxu0 0.0
    %2344 = vmatprep.subr.mxu0 0.0
    %2345 = vmatpush1.msra.mxu0 0.0
    %2346 = vmatprep.mubr.f32.mxu0 0.0
    %2347 = vmatmul.mubr.f32.gmra.mrb[0].mxu0 %v2195
    %v2348 = vpop.f32.mrb[0].mxu0
    %v2349 = vadd.f32 %v2280, %v2348
    %v2350 = vpop.f32.mrb[0].mxu0
    %2351 = vdwg.mxu0
    %vm2352 = vcmp.gt.f32.partialorder %v2349, 20.0
    %v2353 = vmin.f32 %v2349, 20.0
    %v2354 = vmul.f32 %v2353, 1.442695
    %v2355 = vpow.pop %v2354
    %v2356 = vadd.f32 %v2355, 1.0
    %v2357 = vlog2.pop %v2356
    %v2358 = vmul.f32 %v2357, 0.6931472
    %v2359 = vmul.f32 -0.5, %v2355
    %v2360 = vadd.f32 %v2359, 1.0
    %v2361 = vmul.f32 %v2360, %v2355
    %v2362 = vand.u32 2147483647, %v2355
    %vm2363 = vcmp.lt.f32.partialorder %v2362, 0.0004427343
    %v2364 = vsel %vm2363, %v2361, %v2358
    %v2365 = vsel %vm2352, %v2349, %v2364
    %vm2366 = vcmp.gt.f32.partialorder %v2365, 20.0
    %v2367 = vmin.f32 %v2365, 20.0
    %v2368 = vmul.f32 %v2367, 1.442695
    %v2369 = vpow.pop %v2368
    %v2370 = vadd.f32 %v2369, 1.0
    %v2371 = vlog2.pop %v2370
    %v2372 = vmul.f32 %v2371, 0.6931472
    %v2373 = vmul.f32 -0.5, %v2369
    %v2374 = vadd.f32 %v2373, 1.0
    %v2375 = vmul.f32 %v2374, %v2369
    %v2376 = vand.u32 2147483647, %v2369
    %vm2377 = vcmp.lt.f32.partialorder %v2376, 0.0004427343
    %v2378 = vsel %vm2377, %v2375, %v2372
    %v2379 = vsel %vm2366, %v2365, %v2378
    %v2381 = vrot.slane %v2379, 4
    %v2383 = vsel %vm45, %v2264, %v2381
    %2384 = vst.msk [vmem:[%s3] sm:$0xff] %vm75, %v2383
    // Predicated region
    $region22: #{transformer_model_67_forward.1} parent=1 // pred_check
      _
    $region23: #{transformer_model_67_forward.1} parent=1 // pred_check_branch
      %2386 = sbr.rel (0) target = $region25
    $region24: #{transformer_model_67_forward.1} parent=1 // pred_region
      _
    $region25: #{transformer_model_67_forward.1} parent=1 // pred_fallthru
      _
    // Predicated region
    $region26: #{transformer_model_67_forward.1} parent=1 // pred_check
      _
    $region27: #{transformer_model_67_forward.1} parent=1 // pred_check_branch
      %2388 = sbr.rel (0) target = $region29
    $region28: #{transformer_model_67_forward.1} parent=1 // pred_region
      _
    $region29: #{transformer_model_67_forward.1} parent=1 // pred_fallthru
      _
    %2389 = vsyncpa [#allocation3], 1
    %2390 = vsyncpa [#allocation5], 1

</llo_original>
